<compile_context>
chip_gen: v5e
topology: v5e:2x2
jax: 0.10.0
libtpu: 0.0.40
codegen_flags: <defaults>
</compile_context>

<pallas_src>
import functools

import jax
import jax.numpy as jnp
from jax import lax
from jax.experimental import pallas as pl
from jax.experimental.pallas import tpu as pltpu

BN_EPS = 1e-5
KH = KW = 5          # Conv2d kernel_size=(5, 5), stride=1
PAD = 1              # Conv2d padding=1


def _default_vmem_limit():
    """Generation-aware scoped-VMEM budget (~3/4 of physical, capped at 96 MiB)."""
    try:
        cap = int(pltpu.get_tpu_info().vmem_capacity_bytes)
        if cap <= 0:
            cap = 64 * 1024 * 1024
    except Exception:
        cap = 64 * 1024 * 1024
    return max(32 * 1024 * 1024, min(cap * 3 // 4, 96 * 1024 * 1024))


_VMEM_LIMIT = _default_vmem_limit()


# ----------------------- layer 1 (single input channel) ---------------------

def _conv1_kernel(x_ref, wt_ref, b_ref, y_ref, stats_ref,
                  xpad_ref, s1_ref, s2_ref):
    """5x5 conv (stride 1, pad 1) + bias for the Cin=1 input layer.

    x_ref:  (1, Hin, Win) f32  (W on lanes -> no minor-dim-1 lane padding)
    wt_ref: (Cout, 25)    f32  taps, column index = dh*5 + dw
    b_ref:  (Cout, 1)     f32
    y_ref:  (1, Ho, Cout, Wo) bf16  NHCW output (W stays on lanes)
    stats_ref: (1, Cout, 2) f32  per-sample [sum, sumsq] over (Ho, Wo)
    scratch: xpad (Hin+2, Win+2) f32; s1/s2 (Cout, Wo) f32 stat accumulators
    """
    _, Hin, Win = x_ref.shape
    _, Ho, Cout, Wo = y_ref.shape

    # Zero only the 1-element border; the interior is fully overwritten.
    xpad_ref[0:1, :] = jnp.zeros((1, Win + 2), jnp.float32)
    xpad_ref[Hin + 1:Hin + 2, :] = jnp.zeros((1, Win + 2), jnp.float32)
    xpad_ref[:, 0:1] = jnp.zeros((Hin + 2, 1), jnp.float32)
    xpad_ref[:, Win + 1:Win + 2] = jnp.zeros((Hin + 2, 1), jnp.float32)
    xpad_ref[1:1 + Hin, 1:1 + Win] = x_ref[0]

    s1_ref[...] = jnp.zeros_like(s1_ref)
    s2_ref[...] = jnp.zeros_like(s2_ref)

    wt = wt_ref[...]                       # (Cout, 25)
    bias = b_ref[...]                      # (Cout, 1)

    def row(ho, carry):
        slab = xpad_ref[pl.ds(ho, KH), :]                  # (5, Win+2)
        acc = jnp.zeros((Cout, Wo), jnp.float32)
        for dh in range(KH):                               # 25 VPU FMAs / row
            for dw in range(KW):
                t = dh * KW + dw
                xs = slab[dh:dh + 1, dw:dw + Wo]           # (1, Wo)
                acc = acc + wt[:, t:t + 1] * xs            # (Cout, Wo)
        acc = acc + bias
        y_ref[0, ho] = acc.astype(y_ref.dtype)             # lane-dense store
        s1_ref[...] += acc                                 # VALU accumulators
        s2_ref[...] += acc * acc
        return carry

    lax.fori_loop(0, Ho, row, 0)
    # Single cross-lane reduction at the end (instead of one per row).
    stats_ref[0, :, 0:1] = jnp.sum(s1_ref[...], axis=1, keepdims=True)
    stats_ref[0, :, 1:2] = jnp.sum(s2_ref[...], axis=1, keepdims=True)


def conv1(x, w, b):
    """x: (B, Hin, Win) f32; w: (5, 5, 1, Cout) f32; b: (1, Cout) f32."""
    B, Hin, Win = x.shape
    Cout = w.shape[-1]
    Ho = Hin + 2 * PAD - KH + 1
    Wo = Win + 2 * PAD - KW + 1
    assert Ho >= 1 and Wo >= 1
    wt = jnp.transpose(w.reshape(KH * KW, Cout))           # (Cout, 25) f32
    bt = jnp.transpose(b)                                  # (Cout, 1)
    return pl.pallas_call(
        _conv1_kernel,
        out_shape=(jax.ShapeDtypeStruct((B, Ho, Cout, Wo), jnp.bfloat16),
                   jax.ShapeDtypeStruct((B, Cout, 2), jnp.float32)),
        grid=(B,),
        in_specs=[
            pl.BlockSpec((1, Hin, Win), lambda i: (i, 0, 0)),
            pl.BlockSpec((Cout, KH * KW), lambda i: (0, 0)),
            pl.BlockSpec((Cout, 1), lambda i: (0, 0)),
        ],
        out_specs=(pl.BlockSpec((1, Ho, Cout, Wo), lambda i: (i, 0, 0, 0)),
                   pl.BlockSpec((1, Cout, 2), lambda i: (i, 0, 0))),
        scratch_shapes=[pltpu.VMEM((Hin + 2 * PAD, Win + 2 * PAD), jnp.float32),
                        pltpu.VMEM((Cout, Wo), jnp.float32),
                        pltpu.VMEM((Cout, Wo), jnp.float32)],
        compiler_params=pltpu.CompilerParams(
            dimension_semantics=("parallel",),
            vmem_limit_bytes=_VMEM_LIMIT),
    )(x, wt, bt)


# ------------- hidden layers: fused BN+ReLU+pool prologue + conv ------------

def _conv_fused_kernel(yin_ref, sc_ref, sh_ref, w_ref, b_ref, y_ref, stats_ref,
                       xpad_ref, *, in_nhcw, row_block):
    """BN(prev, train stats) + ReLU + 2x2/stride-2 pool + 5x5 conv + bias
    + per-sample BN partial stats, for one sample.

    yin_ref: (1, Hp, C, Wp) bf16 if in_nhcw else (1, Hp, Wp, C) bf16
    sc_ref/sh_ref: BN scale/shift of the PREVIOUS layer ((C,1) / (1,C))
    w_ref: (25*Cin, Cout) bf16;  b_ref: (1, Cout) f32
    y_ref: (1, Ho, Wo, Cout) bf16;  stats_ref: (1, 2, Cout) f32
    xpad_ref: VMEM (Hi+2, Wi+2, Cin) bf16 zero-padded pooled activation
    """
    _, Ho, Wo, Cout = y_ref.shape
    Hpad, Wpad, Cin = xpad_ref.shape
    Hi, Wi = Hpad - 2, Wpad - 2

    # ---- prologue: BN + ReLU + 2x2 max-pool (values only; no strided Refs) --
    y0 = yin_ref[0].astype(jnp.float32)
    if in_nhcw:                                            # (Hp, C, Wp)
        z = jnp.maximum(y0 * sc_ref[...][None] + sh_ref[...][None], 0.0)
        zh = jnp.maximum(z[0:2 * Hi:2], z[1:2 * Hi:2])     # pool H (major axis)
        zt = jnp.transpose(zh, (0, 2, 1))                  # -> (Hi, Wp, C)
        zc = zt[:, :2 * Wi, :]
    else:                                                  # (Hp, Wp, C)
        z = jnp.maximum(y0 * sc_ref[...] + sh_ref[...], 0.0)
        zc = jnp.maximum(z[0:2 * Hi:2], z[1:2 * Hi:2])[:, :2 * Wi, :]
    pooled = jnp.maximum(zc[:, 0::2, :], zc[:, 1::2, :])   # (Hi, Wi, C)

    # ---- zero only the 1-element border; interior fully overwritten --------
    xpad_ref[0:1] = jnp.zeros((1, Wpad, Cin), xpad_ref.dtype)
    xpad_ref[Hpad - 1:Hpad] = jnp.zeros((1, Wpad, Cin), xpad_ref.dtype)
    xpad_ref[:, 0:1] = jnp.zeros((Hpad, 1, Cin), xpad_ref.dtype)
    xpad_ref[:, Wpad - 1:Wpad] = jnp.zeros((Hpad, 1, Cin), xpad_ref.dtype)
    xpad_ref[1:1 + Hi, 1:1 + Wi, :] = pooled.astype(xpad_ref.dtype)

    wm = w_ref[...]                                        # (25*Cin, Cout) bf16
    bias = b_ref[...]                                      # (1, Cout) f32

    def block(ho0, nrows):
        slab = xpad_ref[pl.ds(ho0, nrows + KH - 1)]        # (nrows+4, Wpad, Cin)
        taps = []
        for dh in range(KH):
            rows = slab[dh:dh + nrows]                     # reuse across dw taps
            for dw in range(KW):
                taps.append(rows[:, dw:dw + Wo, :])        # (nrows, Wo, Cin)
        patch = jnp.concatenate(taps, axis=-1).reshape(nrows * Wo, KH * KW * Cin)
        acc = jnp.dot(patch, wm, preferred_element_type=jnp.float32) + bias
        y_ref[0, pl.ds(ho0, nrows)] = (
            acc.reshape(nrows, Wo, Cout).astype(y_ref.dtype))
        return (jnp.sum(acc, axis=0, keepdims=True),
                jnp.sum(acc * acc, axis=0, keepdims=True))

    nb, rem = Ho // row_block, Ho % row_block
    zero = jnp.zeros((1, Cout), jnp.float32)

    def body(rb, carry):
        s1, s2 = carry
        d1, d2 = block(rb * row_block, row_block)
        return (s1 + d1, s2 + d2)

    s1, s2 = lax.fori_loop(0, nb, body, (zero, zero))
    if rem:                                                # static tail block
        d1, d2 = block(nb * row_block, rem)
        s1, s2 = s1 + d1, s2 + d2
    stats_ref[0, 0:1, :] = s1
    stats_ref[0, 1:2, :] = s2


def conv_fused(y_prev, scale, shift, w, b, *, in_nhcw):
    B = y_prev.shape[0]
    if in_nhcw:
        _, Hp, Cin, Wp = y_prev.shape
        sc, sh = scale.reshape(Cin, 1), shift.reshape(Cin, 1)
    else:
        _, Hp, Wp, Cin = y_prev.shape
        sc, sh = scale.reshape(1, Cin), shift.reshape(1, Cin)
    assert Hp >= 2 and Wp >= 2, "degenerate spatial size for 2x2 max-pool"
    Cout = w.shape[-1]
    Hi, Wi = Hp // 2, Wp // 2
    Ho = Hi + 2 * PAD - KH + 1
    Wo = Wi + 2 * PAD - KW + 1
    assert Ho >= 1 and Wo >= 1, "spatial size collapsed below the 5x5 kernel"
    wm = w.reshape(KH * KW * Cin, Cout).astype(jnp.bfloat16)
    # Row blocking: aim for >=256 MXU rows per dot, cap the patch at ~1024 rows.
    R = max(1, min(Ho, -(-256 // Wo), max(1, 1024 // Wo)))
    kern = functools.partial(_conv_fused_kernel, in_nhcw=in_nhcw, row_block=R)
    return pl.pallas_call(
        kern,
        out_shape=(jax.ShapeDtypeStruct((B, Ho, Wo, Cout), jnp.bfloat16),
                   jax.ShapeDtypeStruct((B, 2, Cout), jnp.float32)),
        grid=(B,),
        in_specs=[
            pl.BlockSpec((1,) + y_prev.shape[1:], lambda i: (i, 0, 0, 0)),
            pl.BlockSpec(sc.shape, lambda i: (0, 0)),
            pl.BlockSpec(sh.shape, lambda i: (0, 0)),
            pl.BlockSpec((KH * KW * Cin, Cout), lambda i: (0, 0)),
            pl.BlockSpec((1, Cout), lambda i: (0, 0)),
        ],
        out_specs=(pl.BlockSpec((1, Ho, Wo, Cout), lambda i: (i, 0, 0, 0)),
                   pl.BlockSpec((1, 2, Cout), lambda i: (i, 0, 0))),
        scratch_shapes=[pltpu.VMEM((Hi + 2 * PAD, Wi + 2 * PAD, Cin),
                                   jnp.bfloat16)],
        compiler_params=pltpu.CompilerParams(
            dimension_semantics=("parallel",),
            vmem_limit_bytes=_VMEM_LIMIT),
    )(y_prev, sc, sh, wm, b.astype(jnp.float32))


# ------------- epilogue: BN+ReLU+pool+global-max + all task heads -----------

def _head_kernel(y_ref, sc_ref, sh_ref, wc_ref, bc_ref, o_ref, *,
                 in_nhcw, head_slices):
    """Last layer BN+ReLU, (2x2 pool + global max == crop + global max), then
    all task heads through one fused GEMM + per-head activation, per sample."""
    y0 = y_ref[0].astype(jnp.float32)
    if in_nhcw:                                            # (Hp, C, Wp)
        z = jnp.maximum(y0 * sc_ref[...][None] + sh_ref[...][None], 0.0)
        Hp, _, Wp = z.shape
        ch, cw = 2 * (Hp // 2), 2 * (Wp // 2)
        m = jnp.max(z[:ch, :, :cw], axis=2)                # (ch, C)
    else:                                                  # (Hp, Wp, C)
        z = jnp.maximum(y0 * sc_ref[...] + sh_ref[...], 0.0)
        Hp, Wp, _ = z.shape
        ch, cw = 2 * (Hp // 2), 2 * (Wp // 2)
        m = jnp.max(z[:ch, :cw, :], axis=1)                # (ch, C)
    feat = jnp.max(m, axis=0, keepdims=True)               # (1, C)

    logits = jnp.dot(feat, wc_ref[...],
                     preferred_element_type=jnp.float32) + bc_ref[...]
    outs = []
    for (start, stop, ctype) in head_slices:
        lg = logits[:, start:stop]
        if ctype == "multi-class":                         # torch.log_softmax
            mx = jnp.max(lg, axis=-1, keepdims=True)
            sv = lg - mx
            outs.append(sv - jnp.log(jnp.sum(jnp.exp(sv), axis=-1,
                                             keepdims=True)))
        else:                                              # torch.sigmoid
            outs.append(1.0 / (1.0 + jnp.exp(-lg)))
    o_ref[0] = jnp.concatenate(outs, axis=-1)


def fused_head(y, scale, shift, wcat, bcat, head_slices, *, in_nhcw):
    B = y.shape[0]
    if in_nhcw:
        _, Hp, C, Wp = y.shape
        sc, sh = scale.reshape(C, 1), shift.reshape(C, 1)
    else:
        _, Hp, Wp, C = y.shape
        sc, sh = scale.reshape(1, C), shift.reshape(1, C)
    assert Hp >= 2 and Wp >= 2, "degenerate spatial size for 2x2 max-pool"
    Ntot = wcat.shape[1]
    kern = functools.partial(_head_kernel, in_nhcw=in_nhcw,
                             head_slices=tuple(head_slices))
    out = pl.pallas_call(
        kern,
        out_shape=jax.ShapeDtypeStruct((B, 1, Ntot), jnp.float32),
        grid=(B,),
        in_specs=[
            pl.BlockSpec((1,) + y.shape[1:], lambda i: (i, 0, 0, 0)),
            pl.BlockSpec(sc.shape, lambda i: (0, 0)),
            pl.BlockSpec(sh.shape, lambda i: (0, 0)),
            pl.BlockSpec(wcat.shape, lambda i: (0, 0)),
            pl.BlockSpec(bcat.shape, lambda i: (0, 0)),
        ],
        out_specs=pl.BlockSpec((1, 1, Ntot), lambda i: (i, 0, 0)),
        compiler_params=pltpu.CompilerParams(
            dimension_semantics=("parallel",),
            vmem_limit_bytes=_VMEM_LIMIT),
    )(y, sc, sh, wcat.astype(jnp.float32), bcat.astype(jnp.float32))
    return out.reshape(B, Ntot)


# ------------------------------- glue + model -------------------------------

def _finalize_bn(stats, gamma, beta, count, *, stats_cx2):
    """BN(train) scale/shift from per-sample [sum, sumsq] partials (tiny op)."""
    s = jnp.sum(stats, axis=0)
    if stats_cx2:                      # (C, 2) layout (layer-1 kernel)
        s1, s2 = s[:, 0], s[:, 1]
    else:                              # (2, C) layout (fused conv kernel)
        s1, s2 = s[0, :], s[1, :]
    inv = 1.0 / float(count)
    mean = s1 * inv
    var = jnp.maximum(s2 * inv - mean * mean, 0.0)   # clamp E[x^2]-E[x]^2
    scale = gamma.reshape(-1) * lax.rsqrt(var + BN_EPS)
    shift = beta.reshape(-1) - mean * scale
    return scale, shift


def forward(x, params):
    """x: (batch_size, time_steps, mel_bins) -> tuple of per-task outputs."""
    convs = params["conv"]
    n_layers = len(convs)
    assert convs[0][0].shape[2] == 1, "first conv layer must have Cin == 1"

    # Layer 1: Cin=1 special case (2-D lane-dense layout, VPU conv, NHCW out).
    w0, b0, gamma, beta = convs[0]
    y, stats = conv1(x.astype(jnp.float32), w0, b0)
    nhcw, stats_cx2 = True, True

    # Layers 2..n: previous BN+ReLU+pool fused into the conv prologue.
    for li in range(1, n_layers):
        Hp = y.shape[1]
        Wp = y.shape[3] if nhcw else y.shape[2]
        scale, shift = _finalize_bn(stats, gamma, beta, y.shape[0] * Hp * Wp,
                                    stats_cx2=stats_cx2)
        w, b, gamma, beta = convs[li]
        y, stats = conv_fused(y, scale, shift, w, b, in_nhcw=nhcw)
        nhcw, stats_cx2 = False, False

    # Epilogue: last BN+ReLU+pool+global-max and all task heads, one kernel.
    Hp = y.shape[1]
    Wp = y.shape[3] if nhcw else y.shape[2]
    scale, shift = _finalize_bn(stats, gamma, beta, y.shape[0] * Hp * Wp,
                                stats_cx2=stats_cx2)
    wcat = jnp.concatenate([wt for (wt, bt, ct) in params["heads"]], axis=1)
    bcat = jnp.concatenate([bt for (wt, bt, ct) in params["heads"]], axis=1)
    head_slices, off = [], 0
    for (wt, bt, ct) in params["heads"]:
        head_slices.append((off, off + wt.shape[1], ct))
        off += wt.shape[1]
    out = fused_head(y, scale, shift, wcat, bcat, head_slices, in_nhcw=nhcw)
    # TODO(synk): F.dropout for drop_rate != None is not implemented (no-op).
    return tuple(out[:, s:e] for (s, e, _) in head_slices)


def init_params(key, input_channels=1, hidden_size=32, n_hidden=2,
                task_defs=(("multi-class", 5), ("multi-label", 3))):
    params = {"conv": [], "heads": []}
    for k in range(n_hidden):
        in_ch = input_channels if k == 0 else hidden_size
        key, k1, k2 = jax.random.split(key, 3)
        fan_in, fan_out = in_ch * 25, hidden_size * 25
        a = (6.0 / (fan_in + fan_out)) ** 0.5                 # xavier_uniform
        w = jax.random.uniform(k1, (KH, KW, in_ch, hidden_size),
                               jnp.float32, -a, a)
        b = jnp.zeros((1, hidden_size), jnp.float32)
        gamma = (1.0 + 0.02 * jax.random.normal(
            k2, (1, hidden_size))).astype(jnp.float32)
        beta = jnp.zeros((1, hidden_size), jnp.float32)
        params["conv"].append((w, b, gamma, beta))
    for (ctype, n_out) in task_defs:
        key, k1 = jax.random.split(key)
        a = (6.0 / (hidden_size + n_out)) ** 0.5
        wt = jax.random.uniform(k1, (hidden_size, n_out), jnp.float32, -a, a)
        bt = jnp.zeros((1, n_out), jnp.float32)
        params["heads"].append((wt, bt, ctype))
    return params


def reference_forward(x, params):
    # Pure-JAX reference mirroring the PyTorch forward (sanity check only).
    h = x.astype(jnp.float32)[..., None]
    for (w, b, gamma, beta) in params["conv"]:
        y = jax.lax.conv_general_dilated(
            h, w, window_strides=(1, 1), padding=((1, 1), (1, 1)),
            dimension_numbers=("NHWC", "HWIO", "NHWC"),
            precision=jax.lax.Precision.HIGHEST) + b.reshape(1, 1, 1, -1)
        mean = jnp.mean(y, axis=(0, 1, 2))
        var = jnp.mean((y - mean) ** 2, axis=(0, 1, 2))
        y = (y - mean) * jax.lax.rsqrt(var + BN_EPS) * gamma.reshape(-1) \
            + beta.reshape(-1)
        y = jnp.maximum(y, 0.0)
        Bn, H, W, C = y.shape
        y = y[:, :2 * (H // 2), :2 * (W // 2), :]
        h = y.reshape(Bn, H // 2, 2, W // 2, 2, C).max(axis=(2, 4))
    feat = jnp.max(h, axis=(1, 2))
    outs = []
    for (wt, bt, ctype) in params["heads"]:
        logits = jnp.dot(feat, wt,
                         precision=jax.lax.Precision.HIGHEST) + bt.reshape(-1)
        if ctype == "multi-class":
            outs.append(jax.nn.log_softmax(logits, axis=-1))
        else:
            outs.append(jax.nn.sigmoid(logits))
    return tuple(outs)


if __name__ == "__main__":
    key = jax.random.PRNGKey(0)
    kx, kp = jax.random.split(key)
    # x: (batch_size, time_steps, mel_bins)
    x = jax.random.normal(kx, (2, 16, 16), jnp.float32)
    params = init_params(kp)

    outs = forward(x, params)
    outs = jax.block_until_ready(outs)

    refs = reference_forward(x, params)
    assert len(outs) == len(refs)
    for o, r in zip(outs, refs):
        assert o.shape == r.shape
        assert bool(jnp.all(jnp.isfinite(o)))
        assert bool(jnp.allclose(o.astype(jnp.float32), r, atol=5e-2, rtol=5e-2))
    print("KERNEL_OK")
</pallas_src>

<mosaic_0001>
module attributes {stable_mosaic.version = 11 : i64} {
  func.func @_conv1_kernel(%arg0: i32, %arg1: memref<1x16x16xf32, #tpu.memory_space<vmem>>, %arg2: memref<32x25xf32, #tpu.memory_space<vmem>>, %arg3: memref<32x1xf32, #tpu.memory_space<vmem>>, %arg4: memref<1x14x32x14xbf16, #tpu.memory_space<vmem>>, %arg5: memref<1x32x2xf32, #tpu.memory_space<vmem>>, %arg6: memref<18x18xf32, #tpu.memory_space<vmem>>, %arg7: memref<32x14xf32, #tpu.memory_space<vmem>>, %arg8: memref<32x14xf32, #tpu.memory_space<vmem>>) attributes {dimension_semantics = [#tpu.dimension_semantics<parallel>], iteration_bounds = array<i64: 2>, scalar_prefetch = 0 : i64, scratch_operands = 3 : i64, tpu.core_type = #tpu.core_type<tc>, window_params = [{transform_indices = @transform_0, window_bounds = array<i64: 1, 16, 16>}, {pipeline_mode = #tpu.pipeline_mode<synchronous>, transform_indices = @transform_1, window_bounds = array<i64: 32, 25>}, {pipeline_mode = #tpu.pipeline_mode<synchronous>, transform_indices = @transform_2, window_bounds = array<i64: 32, 1>}, {transform_indices = @transform_3, window_bounds = array<i64: 1, 14, 32, 14>}, {transform_indices = @transform_4, window_bounds = array<i64: 1, 32, 2>}]} {
    %cst = arith.constant 0.000000e+00 : f32
    %0 = vector.broadcast %cst : f32 to vector<1x18xf32>
    %c0 = arith.constant 0 : index
    %c0_0 = arith.constant 0 : index
    %1 = vector.load %arg6[%c0, %c0_0] : memref<18x18xf32, #tpu.memory_space<vmem>>, vector<1x18xf32>
    tpu.vector_store %arg6[%c0, %c0_0], %0 {strides = array<i32>} : memref<18x18xf32, #tpu.memory_space<vmem>>, vector<1x18xf32>,
    %cst_1 = arith.constant 0.000000e+00 : f32
    %2 = vector.broadcast %cst_1 : f32 to vector<1x18xf32>
    %c17 = arith.constant 17 : index
    %c0_2 = arith.constant 0 : index
    %3 = vector.load %arg6[%c17, %c0_2] : memref<18x18xf32, #tpu.memory_space<vmem>>, vector<1x18xf32>
    tpu.vector_store %arg6[%c17, %c0_2], %2 {strides = array<i32>} : memref<18x18xf32, #tpu.memory_space<vmem>>, vector<1x18xf32>,
    %cst_3 = arith.constant 0.000000e+00 : f32
    %4 = vector.broadcast %cst_3 : f32 to vector<18x1xf32>
    %c0_4 = arith.constant 0 : index
    %c0_5 = arith.constant 0 : index
    %5 = vector.load %arg6[%c0_4, %c0_5] : memref<18x18xf32, #tpu.memory_space<vmem>>, vector<18x1xf32>
    tpu.vector_store %arg6[%c0_4, %c0_5], %4 {strides = array<i32>} : memref<18x18xf32, #tpu.memory_space<vmem>>, vector<18x1xf32>,
    %cst_6 = arith.constant 0.000000e+00 : f32
    %6 = vector.broadcast %cst_6 : f32 to vector<18x1xf32>
    %c0_7 = arith.constant 0 : index
    %c17_8 = arith.constant 17 : index
    %7 = vector.load %arg6[%c0_7, %c17_8] : memref<18x18xf32, #tpu.memory_space<vmem>>, vector<18x1xf32>
    tpu.vector_store %arg6[%c0_7, %c17_8], %6 {strides = array<i32>} : memref<18x18xf32, #tpu.memory_space<vmem>>, vector<18x1xf32>,
    %c0_9 = arith.constant 0 : index
    %c0_10 = arith.constant 0 : index
    %c0_11 = arith.constant 0 : index
    %8 = vector.load %arg1[%c0_9, %c0_10, %c0_11] : memref<1x16x16xf32, #tpu.memory_space<vmem>>, vector<1x16x16xf32>
    %9 = vector.shape_cast %8 : vector<1x16x16xf32> to vector<16x16xf32>
    %c1 = arith.constant 1 : index
    %c1_12 = arith.constant 1 : index
    %10 = vector.load %arg6[%c1, %c1_12] : memref<18x18xf32, #tpu.memory_space<vmem>>, vector<16x16xf32>
    tpu.vector_store %arg6[%c1, %c1_12], %9 {strides = array<i32>} : memref<18x18xf32, #tpu.memory_space<vmem>>, vector<16x16xf32>,
    %cst_13 = arith.constant 0.000000e+00 : f32
    %11 = vector.broadcast %cst_13 : f32 to vector<32x14xf32>
    %c0_14 = arith.constant 0 : index
    %c0_15 = arith.constant 0 : index
    %12 = vector.load %arg7[%c0_14, %c0_15] : memref<32x14xf32, #tpu.memory_space<vmem>>, vector<32x14xf32>
    tpu.vector_store %arg7[%c0_14, %c0_15], %11 {strides = array<i32>} : memref<32x14xf32, #tpu.memory_space<vmem>>, vector<32x14xf32>,
    %cst_16 = arith.constant 0.000000e+00 : f32
    %13 = vector.broadcast %cst_16 : f32 to vector<32x14xf32>
    %c0_17 = arith.constant 0 : index
    %c0_18 = arith.constant 0 : index
    %14 = vector.load %arg8[%c0_17, %c0_18] : memref<32x14xf32, #tpu.memory_space<vmem>>, vector<32x14xf32>
    tpu.vector_store %arg8[%c0_17, %c0_18], %13 {strides = array<i32>} : memref<32x14xf32, #tpu.memory_space<vmem>>, vector<32x14xf32>,
    %c0_19 = arith.constant 0 : index
    %c0_20 = arith.constant 0 : index
    %15 = vector.load %arg2[%c0_19, %c0_20] : memref<32x25xf32, #tpu.memory_space<vmem>>, vector<32x25xf32>
    %c0_21 = arith.constant 0 : index
    %c0_22 = arith.constant 0 : index
    %16 = vector.load %arg3[%c0_21, %c0_22] : memref<32x1xf32, #tpu.memory_space<vmem>>, vector<32x1xf32>
    %c0_i32 = arith.constant 0 : i32
    %c14_i32 = arith.constant 14 : i32
    %17 = arith.addi %c0_i32, %c14_i32 : i32
    %c1_i32 = arith.constant 1 : i32
    scf.for %arg9 = %c0_i32 to %17 step %c1_i32  : i32 {
      %30 = arith.index_cast %arg9 : i32 to index
      %c0_36 = arith.constant 0 : index
      %31 = vector.load %arg6[%30, %c0_36] : memref<18x18xf32, #tpu.memory_space<vmem>>, vector<5x18xf32>
      %cst_37 = arith.constant 0.000000e+00 : f32
      %32 = vector.broadcast %cst_37 : f32 to vector<32x14xf32>
      %33 = vector.extract_strided_slice %31 {offsets = [0, 0], sizes = [1, 14], strides = [1, 1]} : vector<5x18xf32> to vector<1x14xf32>
      %34 = vector.extract_strided_slice %15 {offsets = [0, 0], sizes = [32, 1], strides = [1, 1]} : vector<32x25xf32> to vector<32x1xf32>
      %35 = vector.broadcast %34 : vector<32x1xf32> to vector<32x14xf32>
      %36 = vector.broadcast %33 : vector<1x14xf32> to vector<32x14xf32>
      %37 = arith.mulf %35, %36 : vector<32x14xf32>
      %38 = arith.addf %32, %37 : vector<32x14xf32>
      %39 = vector.extract_strided_slice %31 {offsets = [0, 1], sizes = [1, 14], strides = [1, 1]} : vector<5x18xf32> to vector<1x14xf32>
      %40 = vector.extract_strided_slice %15 {offsets = [0, 1], sizes = [32, 1], strides = [1, 1]} : vector<32x25xf32> to vector<32x1xf32>
      %41 = vector.broadcast %40 : vector<32x1xf32> to vector<32x14xf32>
      %42 = vector.broadcast %39 : vector<1x14xf32> to vector<32x14xf32>
      %43 = arith.mulf %41, %42 : vector<32x14xf32>
      %44 = arith.addf %38, %43 : vector<32x14xf32>
      %45 = vector.extract_strided_slice %31 {offsets = [0, 2], sizes = [1, 14], strides = [1, 1]} : vector<5x18xf32> to vector<1x14xf32>
      %46 = vector.extract_strided_slice %15 {offsets = [0, 2], sizes = [32, 1], strides = [1, 1]} : vector<32x25xf32> to vector<32x1xf32>
      %47 = vector.broadcast %46 : vector<32x1xf32> to vector<32x14xf32>
      %48 = vector.broadcast %45 : vector<1x14xf32> to vector<32x14xf32>
      %49 = arith.mulf %47, %48 : vector<32x14xf32>
      %50 = arith.addf %44, %49 : vector<32x14xf32>
      %51 = vector.extract_strided_slice %31 {offsets = [0, 3], sizes = [1, 14], strides = [1, 1]} : vector<5x18xf32> to vector<1x14xf32>
      %52 = vector.extract_strided_slice %15 {offsets = [0, 3], sizes = [32, 1], strides = [1, 1]} : vector<32x25xf32> to vector<32x1xf32>
      %53 = vector.broadcast %52 : vector<32x1xf32> to vector<32x14xf32>
      %54 = vector.broadcast %51 : vector<1x14xf32> to vector<32x14xf32>
      %55 = arith.mulf %53, %54 : vector<32x14xf32>
      %56 = arith.addf %50, %55 : vector<32x14xf32>
      %57 = vector.extract_strided_slice %31 {offsets = [0, 4], sizes = [1, 14], strides = [1, 1]} : vector<5x18xf32> to vector<1x14xf32>
      %58 = vector.extract_strided_slice %15 {offsets = [0, 4], sizes = [32, 1], strides = [1, 1]} : vector<32x25xf32> to vector<32x1xf32>
      %59 = vector.broadcast %58 : vector<32x1xf32> to vector<32x14xf32>
      %60 = vector.broadcast %57 : vector<1x14xf32> to vector<32x14xf32>
      %61 = arith.mulf %59, %60 : vector<32x14xf32>
      %62 = arith.addf %56, %61 : vector<32x14xf32>
      %63 = vector.extract_strided_slice %31 {offsets = [1, 0], sizes = [1, 14], strides = [1, 1]} : vector<5x18xf32> to vector<1x14xf32>
      %64 = vector.extract_strided_slice %15 {offsets = [0, 5], sizes = [32, 1], strides = [1, 1]} : vector<32x25xf32> to vector<32x1xf32>
      %65 = vector.broadcast %64 : vector<32x1xf32> to vector<32x14xf32>
      %66 = vector.broadcast %63 : vector<1x14xf32> to vector<32x14xf32>
      %67 = arith.mulf %65, %66 : vector<32x14xf32>
      %68 = arith.addf %62, %67 : vector<32x14xf32>
      %69 = vector.extract_strided_slice %31 {offsets = [1, 1], sizes = [1, 14], strides = [1, 1]} : vector<5x18xf32> to vector<1x14xf32>
      %70 = vector.extract_strided_slice %15 {offsets = [0, 6], sizes = [32, 1], strides = [1, 1]} : vector<32x25xf32> to vector<32x1xf32>
      %71 = vector.broadcast %70 : vector<32x1xf32> to vector<32x14xf32>
      %72 = vector.broadcast %69 : vector<1x14xf32> to vector<32x14xf32>
      %73 = arith.mulf %71, %72 : vector<32x14xf32>
      %74 = arith.addf %68, %73 : vector<32x14xf32>
      %75 = vector.extract_strided_slice %31 {offsets = [1, 2], sizes = [1, 14], strides = [1, 1]} : vector<5x18xf32> to vector<1x14xf32>
      %76 = vector.extract_strided_slice %15 {offsets = [0, 7], sizes = [32, 1], strides = [1, 1]} : vector<32x25xf32> to vector<32x1xf32>
      %77 = vector.broadcast %76 : vector<32x1xf32> to vector<32x14xf32>
      %78 = vector.broadcast %75 : vector<1x14xf32> to vector<32x14xf32>
      %79 = arith.mulf %77, %78 : vector<32x14xf32>
      %80 = arith.addf %74, %79 : vector<32x14xf32>
      %81 = vector.extract_strided_slice %31 {offsets = [1, 3], sizes = [1, 14], strides = [1, 1]} : vector<5x18xf32> to vector<1x14xf32>
      %82 = vector.extract_strided_slice %15 {offsets = [0, 8], sizes = [32, 1], strides = [1, 1]} : vector<32x25xf32> to vector<32x1xf32>
      %83 = vector.broadcast %82 : vector<32x1xf32> to vector<32x14xf32>
      %84 = vector.broadcast %81 : vector<1x14xf32> to vector<32x14xf32>
      %85 = arith.mulf %83, %84 : vector<32x14xf32>
      %86 = arith.addf %80, %85 : vector<32x14xf32>
      %87 = vector.extract_strided_slice %31 {offsets = [1, 4], sizes = [1, 14], strides = [1, 1]} : vector<5x18xf32> to vector<1x14xf32>
      %88 = vector.extract_strided_slice %15 {offsets = [0, 9], sizes = [32, 1], strides = [1, 1]} : vector<32x25xf32> to vector<32x1xf32>
      %89 = vector.broadcast %88 : vector<32x1xf32> to vector<32x14xf32>
      %90 = vector.broadcast %87 : vector<1x14xf32> to vector<32x14xf32>
      %91 = arith.mulf %89, %90 : vector<32x14xf32>
      %92 = arith.addf %86, %91 : vector<32x14xf32>
      %93 = vector.extract_strided_slice %31 {offsets = [2, 0], sizes = [1, 14], strides = [1, 1]} : vector<5x18xf32> to vector<1x14xf32>
      %94 = vector.extract_strided_slice %15 {offsets = [0, 10], sizes = [32, 1], strides = [1, 1]} : vector<32x25xf32> to vector<32x1xf32>
      %95 = vector.broadcast %94 : vector<32x1xf32> to vector<32x14xf32>
      %96 = vector.broadcast %93 : vector<1x14xf32> to vector<32x14xf32>
      %97 = arith.mulf %95, %96 : vector<32x14xf32>
      %98 = arith.addf %92, %97 : vector<32x14xf32>
      %99 = vector.extract_strided_slice %31 {offsets = [2, 1], sizes = [1, 14], strides = [1, 1]} : vector<5x18xf32> to vector<1x14xf32>
      %100 = vector.extract_strided_slice %15 {offsets = [0, 11], sizes = [32, 1], strides = [1, 1]} : vector<32x25xf32> to vector<32x1xf32>
      %101 = vector.broadcast %100 : vector<32x1xf32> to vector<32x14xf32>
      %102 = vector.broadcast %99 : vector<1x14xf32> to vector<32x14xf32>
      %103 = arith.mulf %101, %102 : vector<32x14xf32>
      %104 = arith.addf %98, %103 : vector<32x14xf32>
      %105 = vector.extract_strided_slice %31 {offsets = [2, 2], sizes = [1, 14], strides = [1, 1]} : vector<5x18xf32> to vector<1x14xf32>
      %106 = vector.extract_strided_slice %15 {offsets = [0, 12], sizes = [32, 1], strides = [1, 1]} : vector<32x25xf32> to vector<32x1xf32>
      %107 = vector.broadcast %106 : vector<32x1xf32> to vector<32x14xf32>
      %108 = vector.broadcast %105 : vector<1x14xf32> to vector<32x14xf32>
      %109 = arith.mulf %107, %108 : vector<32x14xf32>
      %110 = arith.addf %104, %109 : vector<32x14xf32>
      %111 = vector.extract_strided_slice %31 {offsets = [2, 3], sizes = [1, 14], strides = [1, 1]} : vector<5x18xf32> to vector<1x14xf32>
      %112 = vector.extract_strided_slice %15 {offsets = [0, 13], sizes = [32, 1], strides = [1, 1]} : vector<32x25xf32> to vector<32x1xf32>
      %113 = vector.broadcast %112 : vector<32x1xf32> to vector<32x14xf32>
      %114 = vector.broadcast %111 : vector<1x14xf32> to vector<32x14xf32>
      %115 = arith.mulf %113, %114 : vector<32x14xf32>
      %116 = arith.addf %110, %115 : vector<32x14xf32>
      %117 = vector.extract_strided_slice %31 {offsets = [2, 4], sizes = [1, 14], strides = [1, 1]} : vector<5x18xf32> to vector<1x14xf32>
      %118 = vector.extract_strided_slice %15 {offsets = [0, 14], sizes = [32, 1], strides = [1, 1]} : vector<32x25xf32> to vector<32x1xf32>
      %119 = vector.broadcast %118 : vector<32x1xf32> to vector<32x14xf32>
      %120 = vector.broadcast %117 : vector<1x14xf32> to vector<32x14xf32>
      %121 = arith.mulf %119, %120 : vector<32x14xf32>
      %122 = arith.addf %116, %121 : vector<32x14xf32>
      %123 = vector.extract_strided_slice %31 {offsets = [3, 0], sizes = [1, 14], strides = [1, 1]} : vector<5x18xf32> to vector<1x14xf32>
      %124 = vector.extract_strided_slice %15 {offsets = [0, 15], sizes = [32, 1], strides = [1, 1]} : vector<32x25xf32> to vector<32x1xf32>
      %125 = vector.broadcast %124 : vector<32x1xf32> to vector<32x14xf32>
      %126 = vector.broadcast %123 : vector<1x14xf32> to vector<32x14xf32>
      %127 = arith.mulf %125, %126 : vector<32x14xf32>
      %128 = arith.addf %122, %127 : vector<32x14xf32>
      %129 = vector.extract_strided_slice %31 {offsets = [3, 1], sizes = [1, 14], strides = [1, 1]} : vector<5x18xf32> to vector<1x14xf32>
      %130 = vector.extract_strided_slice %15 {offsets = [0, 16], sizes = [32, 1], strides = [1, 1]} : vector<32x25xf32> to vector<32x1xf32>
      %131 = vector.broadcast %130 : vector<32x1xf32> to vector<32x14xf32>
      %132 = vector.broadcast %129 : vector<1x14xf32> to vector<32x14xf32>
      %133 = arith.mulf %131, %132 : vector<32x14xf32>
      %134 = arith.addf %128, %133 : vector<32x14xf32>
      %135 = vector.extract_strided_slice %31 {offsets = [3, 2], sizes = [1, 14], strides = [1, 1]} : vector<5x18xf32> to vector<1x14xf32>
      %136 = vector.extract_strided_slice %15 {offsets = [0, 17], sizes = [32, 1], strides = [1, 1]} : vector<32x25xf32> to vector<32x1xf32>
      %137 = vector.broadcast %136 : vector<32x1xf32> to vector<32x14xf32>
      %138 = vector.broadcast %135 : vector<1x14xf32> to vector<32x14xf32>
      %139 = arith.mulf %137, %138 : vector<32x14xf32>
      %140 = arith.addf %134, %139 : vector<32x14xf32>
      %141 = vector.extract_strided_slice %31 {offsets = [3, 3], sizes = [1, 14], strides = [1, 1]} : vector<5x18xf32> to vector<1x14xf32>
      %142 = vector.extract_strided_slice %15 {offsets = [0, 18], sizes = [32, 1], strides = [1, 1]} : vector<32x25xf32> to vector<32x1xf32>
      %143 = vector.broadcast %142 : vector<32x1xf32> to vector<32x14xf32>
      %144 = vector.broadcast %141 : vector<1x14xf32> to vector<32x14xf32>
      %145 = arith.mulf %143, %144 : vector<32x14xf32>
      %146 = arith.addf %140, %145 : vector<32x14xf32>
      %147 = vector.extract_strided_slice %31 {offsets = [3, 4], sizes = [1, 14], strides = [1, 1]} : vector<5x18xf32> to vector<1x14xf32>
      %148 = vector.extract_strided_slice %15 {offsets = [0, 19], sizes = [32, 1], strides = [1, 1]} : vector<32x25xf32> to vector<32x1xf32>
      %149 = vector.broadcast %148 : vector<32x1xf32> to vector<32x14xf32>
      %150 = vector.broadcast %147 : vector<1x14xf32> to vector<32x14xf32>
      %151 = arith.mulf %149, %150 : vector<32x14xf32>
      %152 = arith.addf %146, %151 : vector<32x14xf32>
      %153 = vector.extract_strided_slice %31 {offsets = [4, 0], sizes = [1, 14], strides = [1, 1]} : vector<5x18xf32> to vector<1x14xf32>
      %154 = vector.extract_strided_slice %15 {offsets = [0, 20], sizes = [32, 1], strides = [1, 1]} : vector<32x25xf32> to vector<32x1xf32>
      %155 = vector.broadcast %154 : vector<32x1xf32> to vector<32x14xf32>
      %156 = vector.broadcast %153 : vector<1x14xf32> to vector<32x14xf32>
      %157 = arith.mulf %155, %156 : vector<32x14xf32>
      %158 = arith.addf %152, %157 : vector<32x14xf32>
      %159 = vector.extract_strided_slice %31 {offsets = [4, 1], sizes = [1, 14], strides = [1, 1]} : vector<5x18xf32> to vector<1x14xf32>
      %160 = vector.extract_strided_slice %15 {offsets = [0, 21], sizes = [32, 1], strides = [1, 1]} : vector<32x25xf32> to vector<32x1xf32>
      %161 = vector.broadcast %160 : vector<32x1xf32> to vector<32x14xf32>
      %162 = vector.broadcast %159 : vector<1x14xf32> to vector<32x14xf32>
      %163 = arith.mulf %161, %162 : vector<32x14xf32>
      %164 = arith.addf %158, %163 : vector<32x14xf32>
      %165 = vector.extract_strided_slice %31 {offsets = [4, 2], sizes = [1, 14], strides = [1, 1]} : vector<5x18xf32> to vector<1x14xf32>
      %166 = vector.extract_strided_slice %15 {offsets = [0, 22], sizes = [32, 1], strides = [1, 1]} : vector<32x25xf32> to vector<32x1xf32>
      %167 = vector.broadcast %166 : vector<32x1xf32> to vector<32x14xf32>
      %168 = vector.broadcast %165 : vector<1x14xf32> to vector<32x14xf32>
      %169 = arith.mulf %167, %168 : vector<32x14xf32>
      %170 = arith.addf %164, %169 : vector<32x14xf32>
      %171 = vector.extract_strided_slice %31 {offsets = [4, 3], sizes = [1, 14], strides = [1, 1]} : vector<5x18xf32> to vector<1x14xf32>
      %172 = vector.extract_strided_slice %15 {offsets = [0, 23], sizes = [32, 1], strides = [1, 1]} : vector<32x25xf32> to vector<32x1xf32>
      %173 = vector.broadcast %172 : vector<32x1xf32> to vector<32x14xf32>
      %174 = vector.broadcast %171 : vector<1x14xf32> to vector<32x14xf32>
      %175 = arith.mulf %173, %174 : vector<32x14xf32>
      %176 = arith.addf %170, %175 : vector<32x14xf32>
      %177 = vector.extract_strided_slice %31 {offsets = [4, 4], sizes = [1, 14], strides = [1, 1]} : vector<5x18xf32> to vector<1x14xf32>
      %178 = vector.extract_strided_slice %15 {offsets = [0, 24], sizes = [32, 1], strides = [1, 1]} : vector<32x25xf32> to vector<32x1xf32>
      %179 = vector.broadcast %178 : vector<32x1xf32> to vector<32x14xf32>
      %180 = vector.broadcast %177 : vector<1x14xf32> to vector<32x14xf32>
      %181 = arith.mulf %179, %180 : vector<32x14xf32>
      %182 = arith.addf %176, %181 : vector<32x14xf32>
      %183 = vector.broadcast %16 : vector<32x1xf32> to vector<32x14xf32>
      %184 = arith.addf %182, %183 : vector<32x14xf32>
      %185 = arith.truncf %184 : vector<32x14xf32> to vector<32x14xbf16>
      %c0_38 = arith.constant 0 : index
      %186 = arith.index_cast %arg9 : i32 to index
      %c0_39 = arith.constant 0 : index
      %c0_40 = arith.constant 0 : index
      %187 = vector.load %arg4[%c0_38, %186, %c0_39, %c0_40] : memref<1x14x32x14xbf16, #tpu.memory_space<vmem>>, vector<1x1x32x14xbf16>
      %188 = vector.shape_cast %187 : vector<1x1x32x14xbf16> to vector<32x14xbf16>
      %189 = vector.shape_cast %185 : vector<32x14xbf16> to vector<1x1x32x14xbf16>
      tpu.vector_store %arg4[%c0_38, %186, %c0_39, %c0_40], %189 {strides = array<i32>} : memref<1x14x32x14xbf16, #tpu.memory_space<vmem>>, vector<1x1x32x14xbf16>,
      %c0_41 = arith.constant 0 : index
      %c0_42 = arith.constant 0 : index
      %190 = vector.load %arg7[%c0_41, %c0_42] : memref<32x14xf32, #tpu.memory_space<vmem>>, vector<32x14xf32>
      %191 = arith.addf %190, %184 : vector<32x14xf32>
      %c0_43 = arith.constant 0 : index
      %c0_44 = arith.constant 0 : index
      %192 = vector.load %arg7[%c0_43, %c0_44] : memref<32x14xf32, #tpu.memory_space<vmem>>, vector<32x14xf32>
      tpu.vector_store %arg7[%c0_43, %c0_44], %191 {strides = array<i32>} : memref<32x14xf32, #tpu.memory_space<vmem>>, vector<32x14xf32>,
      %c0_45 = arith.constant 0 : index
      %c0_46 = arith.constant 0 : index
      %193 = vector.load %arg8[%c0_45, %c0_46] : memref<32x14xf32, #tpu.memory_space<vmem>>, vector<32x14xf32>
      %194 = arith.mulf %184, %184 : vector<32x14xf32>
      %195 = arith.addf %193, %194 : vector<32x14xf32>
      %c0_47 = arith.constant 0 : index
      %c0_48 = arith.constant 0 : index
      %196 = vector.load %arg8[%c0_47, %c0_48] : memref<32x14xf32, #tpu.memory_space<vmem>>, vector<32x14xf32>
      tpu.vector_store %arg8[%c0_47, %c0_48], %195 {strides = array<i32>} : memref<32x14xf32, #tpu.memory_space<vmem>>, vector<32x14xf32>,
    }
    %c14_i32_23 = arith.constant 14 : i32
    %c0_24 = arith.constant 0 : index
    %c0_25 = arith.constant 0 : index
    %18 = vector.load %arg7[%c0_24, %c0_25] : memref<32x14xf32, #tpu.memory_space<vmem>>, vector<32x14xf32>
    %cst_26 = arith.constant dense<0.000000e+00> : vector<32xf32>
    %19 = vector.multi_reduction <add>, %18, %cst_26 [1] : vector<32x14xf32> to vector<32xf32>
    %20 = vector.shape_cast %19 : vector<32xf32> to vector<32x1xf32>
    %c0_27 = arith.constant 0 : index
    %c0_28 = arith.constant 0 : index
    %c0_29 = arith.constant 0 : index
    %21 = vector.load %arg5[%c0_27, %c0_28, %c0_29] : memref<1x32x2xf32, #tpu.memory_space<vmem>>, vector<1x32x1xf32>
    %22 = vector.shape_cast %21 : vector<1x32x1xf32> to vector<32x1xf32>
    %23 = vector.shape_cast %20 : vector<32x1xf32> to vector<1x32x1xf32>
    tpu.vector_store %arg5[%c0_27, %c0_28, %c0_29], %23 {strides = array<i32>} : memref<1x32x2xf32, #tpu.memory_space<vmem>>, vector<1x32x1xf32>,
    %c0_30 = arith.constant 0 : index
    %c0_31 = arith.constant 0 : index
    %24 = vector.load %arg8[%c0_30, %c0_31] : memref<32x14xf32, #tpu.memory_space<vmem>>, vector<32x14xf32>
    %cst_32 = arith.constant dense<0.000000e+00> : vector<32xf32>
    %25 = vector.multi_reduction <add>, %24, %cst_32 [1] : vector<32x14xf32> to vector<32xf32>
    %26 = vector.shape_cast %25 : vector<32xf32> to vector<32x1xf32>
    %c0_33 = arith.constant 0 : index
    %c0_34 = arith.constant 0 : index
    %c1_35 = arith.constant 1 : index
    %27 = vector.load %arg5[%c0_33, %c0_34, %c1_35] : memref<1x32x2xf32, #tpu.memory_space<vmem>>, vector<1x32x1xf32>
    %28 = vector.shape_cast %27 : vector<1x32x1xf32> to vector<32x1xf32>
    %29 = vector.shape_cast %26 : vector<32x1xf32> to vector<1x32x1xf32>
    tpu.vector_store %arg5[%c0_33, %c0_34, %c1_35], %29 {strides = array<i32>} : memref<1x32x2xf32, #tpu.memory_space<vmem>>, vector<1x32x1xf32>,
    return
  }
  func.func @transform_0(%arg0: i32) -> (i32, i32, i32) {
    %c0_i32 = arith.constant 0 : i32
    %c0_i32_0 = arith.constant 0 : i32
    %c0_i32_1 = arith.constant 0 : i32
    return %arg0, %c0_i32, %c0_i32_0 : i32, i32, i32
  }
  func.func @transform_1(%arg0: i32) -> (i32, i32) {
    %c0_i32 = arith.constant 0 : i32
    %c0_i32_0 = arith.constant 0 : i32
    %c0_i32_1 = arith.constant 0 : i32
    return %c0_i32, %c0_i32_0 : i32, i32
  }
  func.func @transform_2(%arg0: i32) -> (i32, i32) {
    %c0_i32 = arith.constant 0 : i32
    %c0_i32_0 = arith.constant 0 : i32
    %c0_i32_1 = arith.constant 0 : i32
    return %c0_i32, %c0_i32_0 : i32, i32
  }
  func.func @transform_3(%arg0: i32) -> (i32, i32, i32, i32) {
    %c0_i32 = arith.constant 0 : i32
    %c0_i32_0 = arith.constant 0 : i32
    %c0_i32_1 = arith.constant 0 : i32
    %c0_i32_2 = arith.constant 0 : i32
    return %arg0, %c0_i32, %c0_i32_0, %c0_i32_1 : i32, i32, i32, i32
  }
  func.func @transform_4(%arg0: i32) -> (i32, i32, i32) {
    %c0_i32 = arith.constant 0 : i32
    %c0_i32_0 = arith.constant 0 : i32
    %c0_i32_1 = arith.constant 0 : i32
    return %arg0, %c0_i32, %c0_i32_0 : i32, i32, i32
  }
}

</mosaic_0001>

<llo_original>
// kernel: tpu_custom_call.1
$region0: #{tpu_custom_call.1}
  #allocation0 [shape = 'u32[]', space=smem, size = 0x4, offset = 0x4, fixed_abs, tag = 'smem constant byte address 0x4 - core index']
  #allocation1 [shape = 'u32[72,128]{1,0:T(1,128)}', space=vmem, size = 0x9000, scoped, tag = 'internal scratch']
  #allocation2 [shape = 'f32[18,18]{1,0:T(8,128)}', space=vmem, size = 0x3000, scoped, tag = 'scratch operand']
  #allocation3 [shape = 'f32[32,14]{1,0:T(8,128)}', space=vmem, size = 0x4000, scoped, tag = 'scratch operand']
  #allocation4 [shape = 'f32[32,14]{1,0:T(8,128)}', space=vmem, size = 0x4000, scoped, tag = 'scratch operand']
  %s0 = inlined_call_operand.vmem [shape: f32[2,16,16], index: 0, kind: input, shape index: {}]
  %s1 = inlined_call_operand.hbm [shape: f32[32,25], index: 1, kind: input, shape index: {}]
  %s2 = inlined_call_operand.vmem [shape: f32[32,1], index: 2, kind: input, shape index: {}]
  %s3 = inlined_call_operand.vmem [shape: bf16[2,14,32,14], index: 3, kind: output, shape index: {0}]
  %s4 = inlined_call_operand.vmem [shape: f32[2,32,2], index: 4, kind: output, shape index: {1}]
  %5 = xla_tuple %s3, %s4
  %s6 = sld [smem:[#allocation0]]
  $region64: #{tpu_custom_call.1} parent=0
    _
  %s8 = ssub.s32 1, %s6
  %s9 = scalar_select 0, %s8, %s6
  $region1: #{tpu_custom_call.1} parent=0
    #allocation5 [shape = 'u8[16384]{0}', space=vmem, size = 0x4000, scoped, tag = 'input window, operand 1, single buffered']
    #allocation6 [shape = 's32[2]{0}', space=sflag, size = 0x8, scoped, tag = 'scoped memory for tpu_custom_call.1']
    %10 = vsyncpa [#allocation6], 0
    loop: start=0, step=1, limit=4
    $region2: #{tpu_custom_call.1} parent=1 // loop_pre_header
      _
    $region3: #{tpu_custom_call.1} parent=1 // loop_header
      %s12 = sphi 0, %s16
      %p13 = scmp.ge.s32.totalorder %s12, 4
      %s22 = sphi 0, %s24
      %s25 = sphi 0, %s22
      %s26 = sphi 0, %s25
      %s42 = sphi 0, %s26
      %s46 = sphi 0, %s46
      %s48 = sphi 0, %s46
      %s49 = sphi 0, %s48
      %s63 = sphi 0, %s49
      %s67 = sphi 0, %s67
      %s69 = sphi 0, %s67
      %s70 = sphi 0, %s69
      %s84 = sphi 0, %s70
      %s90 = sphi 0, %s92
      %s93 = sphi 0, %s90
      %s94 = sphi 0, %s93
      %s110 = sphi 0, %s94
      %s116 = sphi 0, %s118
      %s119 = sphi 0, %s116
      %s120 = sphi 0, %s119
      %s136 = sphi 0, %s120
    $region4: #{tpu_custom_call.1} parent=1 // loop_header_branch
      %15 = sbr.rel (%p13) target = $region8
    $region5: #{tpu_custom_call.1} parent=1 // loop_body
      %s17 = ssub.s32 %s12, 1
      %s18 = ssub.s32 %s12, 2
      %s19 = sadd.s32 %s12, 1
      %s20 = ssub.s32 %s12, %s19
      %p21 = scmp.eq.s32.totalorder %s20, 0
      %s23 = sadd.s32 %s22, 1
      %s24 = scalar_select %p21, %s22, %s23
      %p27 = pneg %p21
      %p28 = scmp.eq.s32.totalorder %s12, 1
      %p29 = por %p27, %p28
      %p30 = scmp.ne.s32.totalorder %s22, %s25
      %p31 = scmp.eq.s32.totalorder %s12, 0
      %p32 = por %p30, %p31
      %p33 = scmp.ne.s32.totalorder %s22, %s25
      %p34 = scmp.eq.s32.totalorder %s17, 1
      %p35 = por %p33, %p34
      %p36 = scmp.ne.s32.totalorder %s25, %s26
      %p37 = scmp.eq.s32.totalorder %s17, 0
      %p38 = por %p36, %p37
      %p39 = scmp.ne.s32.totalorder %s25, %s26
      %p40 = scmp.eq.s32.totalorder %s18, 1
      %p41 = por %p39, %p40
      %p43 = scmp.ne.s32.totalorder %s26, %s42
      %p44 = scmp.eq.s32.totalorder %s18, 0
      %p45 = por %p43, %p44
      %s47 = sadd.s32 %s46, 1
      %p50 = scmp.eq.s32.totalorder %s12, 1
      %p51 = scmp.ne.s32.totalorder %s46, %s48
      %p52 = scmp.eq.s32.totalorder %s12, 0
      %p53 = por %p51, %p52
      %p54 = scmp.ne.s32.totalorder %s46, %s48
      %p55 = scmp.eq.s32.totalorder %s17, 1
      %p56 = por %p54, %p55
      %p57 = scmp.ne.s32.totalorder %s48, %s49
      %p58 = scmp.eq.s32.totalorder %s17, 0
      %p59 = por %p57, %p58
      %p60 = scmp.ne.s32.totalorder %s48, %s49
      %p61 = scmp.eq.s32.totalorder %s18, 1
      %p62 = por %p60, %p61
      %p64 = scmp.ne.s32.totalorder %s49, %s63
      %p65 = scmp.eq.s32.totalorder %s18, 0
      %p66 = por %p64, %p65
      %s68 = sadd.s32 %s67, 1
      %p71 = scmp.eq.s32.totalorder %s12, 1
      %p72 = scmp.ne.s32.totalorder %s67, %s69
      %p73 = scmp.eq.s32.totalorder %s12, 0
      %p74 = por %p72, %p73
      %p75 = scmp.ne.s32.totalorder %s67, %s69
      %p76 = scmp.eq.s32.totalorder %s17, 1
      %p77 = por %p75, %p76
      %p78 = scmp.ne.s32.totalorder %s69, %s70
      %p79 = scmp.eq.s32.totalorder %s17, 0
      %p80 = por %p78, %p79
      %p81 = scmp.ne.s32.totalorder %s69, %s70
      %p82 = scmp.eq.s32.totalorder %s18, 1
      %p83 = por %p81, %p82
      %p85 = scmp.ne.s32.totalorder %s70, %s84
      %p86 = scmp.eq.s32.totalorder %s18, 0
      %p87 = por %p85, %p86
      %s88 = ssub.s32 %s12, %s19
      %p89 = scmp.eq.s32.totalorder %s88, 0
      %s91 = sadd.s32 %s90, 1
      %s92 = scalar_select %p89, %s90, %s91
      %p95 = pneg %p89
      %p96 = scmp.eq.s32.totalorder %s12, 1
      %p97 = por %p95, %p96
      %p98 = scmp.ne.s32.totalorder %s90, %s93
      %p99 = scmp.eq.s32.totalorder %s12, 0
      %p100 = por %p98, %p99
      %p101 = scmp.ne.s32.totalorder %s90, %s93
      %p102 = scmp.eq.s32.totalorder %s17, 1
      %p103 = por %p101, %p102
      %p104 = scmp.ne.s32.totalorder %s93, %s94
      %p105 = scmp.eq.s32.totalorder %s17, 0
      %p106 = por %p104, %p105
      %p107 = scmp.ne.s32.totalorder %s93, %s94
      %p108 = scmp.eq.s32.totalorder %s18, 1
      %p109 = por %p107, %p108
      %p111 = scmp.ne.s32.totalorder %s94, %s110
      %p112 = scmp.eq.s32.totalorder %s18, 0
      %p113 = por %p111, %p112
      %s114 = ssub.s32 %s12, %s19
      %p115 = scmp.eq.s32.totalorder %s114, 0
      %s117 = sadd.s32 %s116, 1
      %s118 = scalar_select %p115, %s116, %s117
      %p121 = pneg %p115
      %p122 = scmp.eq.s32.totalorder %s12, 1
      %p123 = por %p121, %p122
      %p124 = scmp.ne.s32.totalorder %s116, %s119
      %p125 = scmp.eq.s32.totalorder %s12, 0
      %p126 = por %p124, %p125
      %p127 = scmp.ne.s32.totalorder %s116, %s119
      %p128 = scmp.eq.s32.totalorder %s17, 1
      %p129 = por %p127, %p128
      %p130 = scmp.ne.s32.totalorder %s119, %s120
      %p131 = scmp.eq.s32.totalorder %s17, 0
      %p132 = por %p130, %p131
      %p133 = scmp.ne.s32.totalorder %s119, %s120
      %p134 = scmp.eq.s32.totalorder %s18, 1
      %p135 = por %p133, %p134
      %p137 = scmp.ne.s32.totalorder %s120, %s136
      %p138 = scmp.eq.s32.totalorder %s18, 0
      %p139 = por %p137, %p138
      %p140 = scmp.le.s32.totalorder 1, %s12
      %p141 = scmp.lt.s32.totalorder %s12, 3
      %p142 = pnand %p140, %p141
      %p143 = pneg %p142
      // Predicated region
      $region9: #{tpu_custom_call.1} parent=5 // pred_check
        _
      $region10: #{tpu_custom_call.1} parent=5 // pred_check_branch
        %145 = sbr.rel (%p142) target = $region12
      $region11: #{tpu_custom_call.1} parent=5 // pred_region
        %s146 = ssub.s32 %s12, 1
        // Predicated region
        $region13: #{tpu_custom_call.1} parent=11 // pred_check
          %p147 = pneg %p59
        $region14: #{tpu_custom_call.1} parent=11 // pred_check_branch
          %149 = sbr.rel (%p147) target = $region16
        $region15: #{tpu_custom_call.1} parent=11 // pred_region
          %151 = vsyncadd [#allocation6], 0
          %s152 = sshll.u32 %s1, 4
          %s153 = int_to_ptr.hbm [resolvable:$true] %s152
          %s154 = sshll.u32 [#allocation5], 4
          %s155 = int_to_ptr.vmem [resolvable:$true] %s154
          %160 = dma.hbm_to_vmem [thread:$0]  %s153, 512, %s155, [#allocation6], 128, 128, 8
        $region16: #{tpu_custom_call.1} parent=11 // pred_fallthru
          _
        // Predicated region
        $region17: #{tpu_custom_call.1} parent=11 // pred_check
          %p161 = pneg %p80
        $region18: #{tpu_custom_call.1} parent=11 // pred_check_branch
          %163 = sbr.rel (%p161) target = $region20
        $region19: #{tpu_custom_call.1} parent=11 // pred_region
          _
        $region20: #{tpu_custom_call.1} parent=11 // pred_fallthru
          _
      $region12: #{tpu_custom_call.1} parent=5 // pred_fallthru
        _
      %p164 = scmp.lt.s32.totalorder %s12, 2
      // Predicated region
      $region21: #{tpu_custom_call.1} parent=5 // pred_check
        %p165 = pneg %p164
      $region22: #{tpu_custom_call.1} parent=5 // pred_check_branch
        %167 = sbr.rel (%p165) target = $region24
      $region23: #{tpu_custom_call.1} parent=5 // pred_region
        // Predicated region
        $region25: #{tpu_custom_call.1} parent=23 // pred_check
          %p168 = pneg %p32
        $region26: #{tpu_custom_call.1} parent=23 // pred_check_branch
          %170 = sbr.rel (%p168) target = $region28
        $region27: #{tpu_custom_call.1} parent=23 // pred_region
          %p171 = scmp.lt.s32.totalorder %s12, 1
          %s172 = scalar_select %p171, %s12, 1
          %s173 = smul.addr %s172, 2
          %s174 = smul.addr %s173, 8
          %s175 = scalar_lea.vmem %s0, %s174
        $region28: #{tpu_custom_call.1} parent=23 // pred_fallthru
          _
      $region24: #{tpu_custom_call.1} parent=5 // pred_fallthru
        _
      %p176 = scmp.le.s32.totalorder 1, %s12
      %p177 = scmp.lt.s32.totalorder %s12, 3
      %p178 = pnand %p176, %p177
      %p179 = pneg %p178
      // Predicated region
      $region29: #{tpu_custom_call.1} parent=5 // pred_check
        _
      $region30: #{tpu_custom_call.1} parent=5 // pred_check_branch
        %181 = sbr.rel (%p178) target = $region32
      $region31: #{tpu_custom_call.1} parent=5 // pred_region
        %s182 = ssub.s32 %s12, 1
        // Predicated region
        $region33: #{tpu_custom_call.1} parent=31 // pred_check
          %p183 = pneg %p59
        $region34: #{tpu_custom_call.1} parent=31 // pred_check_branch
          %185 = sbr.rel (%p183) target = $region36
        $region35: #{tpu_custom_call.1} parent=31 // pred_region
          %187 = dma.done [#allocation6], 512
        $region36: #{tpu_custom_call.1} parent=31 // pred_fallthru
          _
        %p188 = scmp.lt.s32.totalorder %s17, 1
        %s189 = scalar_select %p188, %s17, 1
        %s190 = smul.addr %s189, 2
        %s191 = smul.addr %s190, 8
        %s192 = scalar_lea.vmem %s0, %s191
        %p193 = pneg %p38
        %p194 = pneg %p35
        %p195 = pneg %p59
        %p196 = pneg %p56
        %p197 = pneg %p80
        %p198 = pneg %p77
        %p199 = pneg %p106
        %p200 = pneg %p103
        %p201 = scmp.lt.s32.totalorder %s17, 1
        %s202 = scalar_select %p201, %s17, 1
        %s203 = smul.addr %s202, 56
        %s204 = smul.addr %s203, 4
        %s205 = scalar_lea.vmem %s3, %s204
        %p206 = pneg %p132
        %p207 = pneg %p129
        %p208 = scmp.lt.s32.totalorder %s17, 1
        %s209 = scalar_select %p208, %s17, 1
        %s210 = smul.addr %s209, 4
        %s211 = smul.addr %s210, 8
        %s212 = scalar_lea.vmem %s4, %s211
        %p213 = scmp.lt.s32.totalorder %s17, 1
        %s214 = scalar_select %p213, %s17, 1
        %s215 = smul.addr %s214, 2
        %s216 = smul.addr %s215, 8
        %s217 = scalar_lea.vmem %s0, %s216
        %p218 = scmp.lt.s32.totalorder %s17, 1
        %s219 = scalar_select %p218, %s17, 1
        %s220 = smul.addr %s219, 56
        %s221 = smul.addr %s220, 4
        %s222 = scalar_lea.vmem %s3, %s221
        %p223 = scmp.lt.s32.totalorder %s17, 1
        %s224 = scalar_select %p223, %s17, 1
        %s225 = smul.addr %s224, 4
        %s226 = smul.addr %s225, 8
        %s227 = scalar_lea.vmem %s4, %s226
        %vm228 = vcmask 139264
        %229 = vst.msk [vmem:[#allocation2] sm:$0x1] %vm228, 0.0
        %230 = vst.msk [vmem:[#allocation2 + $0x11] sm:$0x1] %vm228, 0.0
        %vm231 = vcmask 7168
        %232 = vst.msk [vmem:[#allocation2] sm:$0xff] %vm231, 0.0
        %233 = vst.msk [vmem:[#allocation2 + $0x8] sm:$0xff] %vm231, 0.0
        %vm234 = vcmask 1024
        %235 = vst.msk [vmem:[#allocation2 + $0x10] sm:$0x3] %vm234, 0.0
        %vm236 = vcmask 146568
        %237 = vst.msk [vmem:[#allocation2] sm:$0xff] %vm236, 0.0
        %238 = vst.msk [vmem:[#allocation2 + $0x8] sm:$0xff] %vm236, 0.0
        %vm239 = vcmask 140424
        %240 = vst.msk [vmem:[#allocation2 + $0x10] sm:$0x3] %vm239, 0.0
        %v241 = vld [vmem:[%s217] sm:$0xff]
        %v242 = vld [vmem:[%s217 + $0x8] sm:$0xff]
        %245 = vrot.lane.b32.xlu0 %v241, 1
        %v246 = vpop.permute.xlu0 %245
        %247 = vrot.lane.b32.xlu0 %v242, 1
        %v248 = vpop.permute.xlu0 %247
        %vm251 = vcmask 138248
        %252 = vst.msk [vmem:[#allocation2 + $0x1] sm:$0xff] %vm251, %v246
        %253 = vst.msk [vmem:[#allocation2 + $0x9] sm:$0xff] %vm251, %v248
        %vm254 = vcmask 113664
        %255 = vst.msk [vmem:[#allocation3] sm:$0xff] %vm254, 0.0
        %256 = vst.msk [vmem:[#allocation3 + $0x8] sm:$0xff] %vm254, 0.0
        %257 = vst.msk [vmem:[#allocation3 + $0x10] sm:$0xff] %vm254, 0.0
        %258 = vst.msk [vmem:[#allocation3 + $0x18] sm:$0xff] %vm254, 0.0
        %259 = vst.msk [vmem:[#allocation4] sm:$0xff] %vm254, 0.0
        %260 = vst.msk [vmem:[#allocation4 + $0x8] sm:$0xff] %vm254, 0.0
        %261 = vst.msk [vmem:[#allocation4 + $0x10] sm:$0xff] %vm254, 0.0
        %262 = vst.msk [vmem:[#allocation4 + $0x18] sm:$0xff] %vm254, 0.0
        %v263 = vld [vmem:[#allocation5] sm:$0xff]
        %v264 = vld [vmem:[#allocation5 + $0x8] sm:$0xff]
        %v265 = vld [vmem:[#allocation5 + $0x10] sm:$0xff]
        %v266 = vld [vmem:[#allocation5 + $0x18] sm:$0xff]
        %v267 = vld [vmem:[%s2] sm:$0xff]
        %v268 = vld [vmem:[%s2 + $0x8] sm:$0xff]
        %v269 = vld [vmem:[%s2 + $0x10] sm:$0xff]
        %v270 = vld [vmem:[%s2 + $0x18] sm:$0xff]
        loop: start=0, step=1, limit=14
        $region37: #{tpu_custom_call.1} parent=31 // loop_pre_header
          _
        $region38: #{tpu_custom_call.1} parent=31 // loop_header
          %s272 = sphi 0, %s276
          %p273 = scmp.ge.s32.totalorder %s272, 14
        $region39: #{tpu_custom_call.1} parent=31 // loop_header_branch
          %275 = sbr.rel (%p273) target = $region43
        $region40: #{tpu_custom_call.1} parent=31 // loop_body
          %s277 = scalar_lea.vmem [#allocation2], %s272
          %v278 = vld [vmem:[%s277] sm:$0x1f]
          %280 = vset.pattern.permute.xlu0 0
          %281 = vperm.xlu0 %280, %v263
          %v282 = vpop.permute.xlu0 %281
          %285 = vset.pattern.permute.xlu0 0
          %286 = vperm.xlu0 %285, %v264
          %v287 = vpop.permute.xlu0 %286
          %290 = vset.pattern.permute.xlu0 0
          %291 = vperm.xlu0 %290, %v265
          %v292 = vpop.permute.xlu0 %291
          %295 = vset.pattern.permute.xlu0 0
          %296 = vperm.xlu0 %295, %v266
          %v297 = vpop.permute.xlu0 %296
          %v299 = vperm.slane %v278, 0
          %v300 = vmul.f32 %v282, %v299
          %v301 = vmul.f32 %v287, %v299
          %v302 = vmul.f32 %v292, %v299
          %v303 = vmul.f32 %v297, %v299
          %v304 = vadd.f32 %v300, 0.0
          %v305 = vadd.f32 %v301, 0.0
          %v306 = vadd.f32 %v302, 0.0
          %v307 = vadd.f32 %v303, 0.0
          %308 = vset.pattern.permute.xlu0 1
          %309 = vperm.xlu0 %308, %v263
          %v310 = vpop.permute.xlu0 %309
          %312 = vset.pattern.permute.xlu0 1
          %313 = vperm.xlu0 %312, %v264
          %v314 = vpop.permute.xlu0 %313
          %316 = vset.pattern.permute.xlu0 1
          %317 = vperm.xlu0 %316, %v265
          %v318 = vpop.permute.xlu0 %317
          %320 = vset.pattern.permute.xlu0 1
          %321 = vperm.xlu0 %320, %v266
          %v322 = vpop.permute.xlu0 %321
          %v324 = vmul.f32 %v310, %v299
          %v325 = vmul.f32 %v314, %v299
          %v326 = vmul.f32 %v318, %v299
          %v327 = vmul.f32 %v322, %v299
          %332 = vrot.lane.b32.xlu0 %v324, 127
          %v333 = vpop.permute.xlu0 %332
          %334 = vrot.lane.b32.xlu0 %v325, 127
          %v335 = vpop.permute.xlu0 %334
          %336 = vrot.lane.b32.xlu0 %v326, 127
          %v337 = vpop.permute.xlu0 %336
          %338 = vrot.lane.b32.xlu0 %v327, 127
          %v339 = vpop.permute.xlu0 %338
          %v344 = vadd.f32 %v304, %v333
          %v345 = vadd.f32 %v305, %v335
          %v346 = vadd.f32 %v306, %v337
          %v347 = vadd.f32 %v307, %v339
          %348 = vset.pattern.permute.xlu0 2
          %349 = vperm.xlu0 %348, %v263
          %v350 = vpop.permute.xlu0 %349
          %352 = vset.pattern.permute.xlu0 2
          %353 = vperm.xlu0 %352, %v264
          %v354 = vpop.permute.xlu0 %353
          %356 = vset.pattern.permute.xlu0 2
          %357 = vperm.xlu0 %356, %v265
          %v358 = vpop.permute.xlu0 %357
          %360 = vset.pattern.permute.xlu0 2
          %361 = vperm.xlu0 %360, %v266
          %v362 = vpop.permute.xlu0 %361
          %v364 = vmul.f32 %v350, %v299
          %v365 = vmul.f32 %v354, %v299
          %v366 = vmul.f32 %v358, %v299
          %v367 = vmul.f32 %v362, %v299
          %372 = vrot.lane.b32.xlu0 %v364, 126
          %v373 = vpop.permute.xlu0 %372
          %374 = vrot.lane.b32.xlu0 %v365, 126
          %v375 = vpop.permute.xlu0 %374
          %376 = vrot.lane.b32.xlu0 %v366, 126
          %v377 = vpop.permute.xlu0 %376
          %378 = vrot.lane.b32.xlu0 %v367, 126
          %v379 = vpop.permute.xlu0 %378
          %v384 = vadd.f32 %v344, %v373
          %v385 = vadd.f32 %v345, %v375
          %v386 = vadd.f32 %v346, %v377
          %v387 = vadd.f32 %v347, %v379
          %388 = vset.pattern.permute.xlu0 3
          %389 = vperm.xlu0 %388, %v263
          %v390 = vpop.permute.xlu0 %389
          %392 = vset.pattern.permute.xlu0 3
          %393 = vperm.xlu0 %392, %v264
          %v394 = vpop.permute.xlu0 %393
          %396 = vset.pattern.permute.xlu0 3
          %397 = vperm.xlu0 %396, %v265
          %v398 = vpop.permute.xlu0 %397
          %400 = vset.pattern.permute.xlu0 3
          %401 = vperm.xlu0 %400, %v266
          %v402 = vpop.permute.xlu0 %401
          %v404 = vmul.f32 %v390, %v299
          %v405 = vmul.f32 %v394, %v299
          %v406 = vmul.f32 %v398, %v299
          %v407 = vmul.f32 %v402, %v299
          %412 = vrot.lane.b32.xlu0 %v404, 125
          %v413 = vpop.permute.xlu0 %412
          %414 = vrot.lane.b32.xlu0 %v405, 125
          %v415 = vpop.permute.xlu0 %414
          %416 = vrot.lane.b32.xlu0 %v406, 125
          %v417 = vpop.permute.xlu0 %416
          %418 = vrot.lane.b32.xlu0 %v407, 125
          %v419 = vpop.permute.xlu0 %418
          %v424 = vadd.f32 %v384, %v413
          %v425 = vadd.f32 %v385, %v415
          %v426 = vadd.f32 %v386, %v417
          %v427 = vadd.f32 %v387, %v419
          %428 = vset.pattern.permute.xlu0 4
          %429 = vperm.xlu0 %428, %v263
          %v430 = vpop.permute.xlu0 %429
          %432 = vset.pattern.permute.xlu0 4
          %433 = vperm.xlu0 %432, %v264
          %v434 = vpop.permute.xlu0 %433
          %436 = vset.pattern.permute.xlu0 4
          %437 = vperm.xlu0 %436, %v265
          %v438 = vpop.permute.xlu0 %437
          %440 = vset.pattern.permute.xlu0 4
          %441 = vperm.xlu0 %440, %v266
          %v442 = vpop.permute.xlu0 %441
          %v444 = vmul.f32 %v430, %v299
          %v445 = vmul.f32 %v434, %v299
          %v446 = vmul.f32 %v438, %v299
          %v447 = vmul.f32 %v442, %v299
          %452 = vrot.lane.b32.xlu0 %v444, 124
          %v453 = vpop.permute.xlu0 %452
          %454 = vrot.lane.b32.xlu0 %v445, 124
          %v455 = vpop.permute.xlu0 %454
          %456 = vrot.lane.b32.xlu0 %v446, 124
          %v457 = vpop.permute.xlu0 %456
          %458 = vrot.lane.b32.xlu0 %v447, 124
          %v459 = vpop.permute.xlu0 %458
          %v464 = vadd.f32 %v424, %v453
          %v465 = vadd.f32 %v425, %v455
          %v466 = vadd.f32 %v426, %v457
          %v467 = vadd.f32 %v427, %v459
          %468 = vset.pattern.permute.xlu0 5
          %469 = vperm.xlu0 %468, %v263
          %v470 = vpop.permute.xlu0 %469
          %472 = vset.pattern.permute.xlu0 5
          %473 = vperm.xlu0 %472, %v264
          %v474 = vpop.permute.xlu0 %473
          %476 = vset.pattern.permute.xlu0 5
          %477 = vperm.xlu0 %476, %v265
          %v478 = vpop.permute.xlu0 %477
          %480 = vset.pattern.permute.xlu0 5
          %481 = vperm.xlu0 %480, %v266
          %v482 = vpop.permute.xlu0 %481
          %v484 = vperm.slane %v278, 1
          %v485 = vmul.f32 %v470, %v484
          %v486 = vmul.f32 %v474, %v484
          %v487 = vmul.f32 %v478, %v484
          %v488 = vmul.f32 %v482, %v484
          %v489 = vadd.f32 %v464, %v485
          %v490 = vadd.f32 %v465, %v486
          %v491 = vadd.f32 %v466, %v487
          %v492 = vadd.f32 %v467, %v488
          %493 = vset.pattern.permute.xlu0 6
          %494 = vperm.xlu0 %493, %v263
          %v495 = vpop.permute.xlu0 %494
          %497 = vset.pattern.permute.xlu0 6
          %498 = vperm.xlu0 %497, %v264
          %v499 = vpop.permute.xlu0 %498
          %501 = vset.pattern.permute.xlu0 6
          %502 = vperm.xlu0 %501, %v265
          %v503 = vpop.permute.xlu0 %502
          %505 = vset.pattern.permute.xlu0 6
          %506 = vperm.xlu0 %505, %v266
          %v507 = vpop.permute.xlu0 %506
          %v509 = vmul.f32 %v495, %v484
          %v510 = vmul.f32 %v499, %v484
          %v511 = vmul.f32 %v503, %v484
          %v512 = vmul.f32 %v507, %v484
          %517 = vrot.lane.b32.xlu0 %v509, 127
          %v518 = vpop.permute.xlu0 %517
          %519 = vrot.lane.b32.xlu0 %v510, 127
          %v520 = vpop.permute.xlu0 %519
          %521 = vrot.lane.b32.xlu0 %v511, 127
          %v522 = vpop.permute.xlu0 %521
          %523 = vrot.lane.b32.xlu0 %v512, 127
          %v524 = vpop.permute.xlu0 %523
          %v529 = vadd.f32 %v489, %v518
          %v530 = vadd.f32 %v490, %v520
          %v531 = vadd.f32 %v491, %v522
          %v532 = vadd.f32 %v492, %v524
          %533 = vset.pattern.permute.xlu0 7
          %534 = vperm.xlu0 %533, %v263
          %v535 = vpop.permute.xlu0 %534
          %537 = vset.pattern.permute.xlu0 7
          %538 = vperm.xlu0 %537, %v264
          %v539 = vpop.permute.xlu0 %538
          %541 = vset.pattern.permute.xlu0 7
          %542 = vperm.xlu0 %541, %v265
          %v543 = vpop.permute.xlu0 %542
          %545 = vset.pattern.permute.xlu0 7
          %546 = vperm.xlu0 %545, %v266
          %v547 = vpop.permute.xlu0 %546
          %v549 = vmul.f32 %v535, %v484
          %v550 = vmul.f32 %v539, %v484
          %v551 = vmul.f32 %v543, %v484
          %v552 = vmul.f32 %v547, %v484
          %557 = vrot.lane.b32.xlu0 %v549, 126
          %v558 = vpop.permute.xlu0 %557
          %559 = vrot.lane.b32.xlu0 %v550, 126
          %v560 = vpop.permute.xlu0 %559
          %561 = vrot.lane.b32.xlu0 %v551, 126
          %v562 = vpop.permute.xlu0 %561
          %563 = vrot.lane.b32.xlu0 %v552, 126
          %v564 = vpop.permute.xlu0 %563
          %v569 = vadd.f32 %v529, %v558
          %v570 = vadd.f32 %v530, %v560
          %v571 = vadd.f32 %v531, %v562
          %v572 = vadd.f32 %v532, %v564
          %573 = vset.pattern.permute.xlu0 8
          %574 = vperm.xlu0 %573, %v263
          %v575 = vpop.permute.xlu0 %574
          %577 = vset.pattern.permute.xlu0 8
          %578 = vperm.xlu0 %577, %v264
          %v579 = vpop.permute.xlu0 %578
          %581 = vset.pattern.permute.xlu0 8
          %582 = vperm.xlu0 %581, %v265
          %v583 = vpop.permute.xlu0 %582
          %585 = vset.pattern.permute.xlu0 8
          %586 = vperm.xlu0 %585, %v266
          %v587 = vpop.permute.xlu0 %586
          %v589 = vmul.f32 %v575, %v484
          %v590 = vmul.f32 %v579, %v484
          %v591 = vmul.f32 %v583, %v484
          %v592 = vmul.f32 %v587, %v484
          %597 = vrot.lane.b32.xlu0 %v589, 125
          %v598 = vpop.permute.xlu0 %597
          %599 = vrot.lane.b32.xlu0 %v590, 125
          %v600 = vpop.permute.xlu0 %599
          %601 = vrot.lane.b32.xlu0 %v591, 125
          %v602 = vpop.permute.xlu0 %601
          %603 = vrot.lane.b32.xlu0 %v592, 125
          %v604 = vpop.permute.xlu0 %603
          %v609 = vadd.f32 %v569, %v598
          %v610 = vadd.f32 %v570, %v600
          %v611 = vadd.f32 %v571, %v602
          %v612 = vadd.f32 %v572, %v604
          %613 = vset.pattern.permute.xlu0 9
          %614 = vperm.xlu0 %613, %v263
          %v615 = vpop.permute.xlu0 %614
          %617 = vset.pattern.permute.xlu0 9
          %618 = vperm.xlu0 %617, %v264
          %v619 = vpop.permute.xlu0 %618
          %621 = vset.pattern.permute.xlu0 9
          %622 = vperm.xlu0 %621, %v265
          %v623 = vpop.permute.xlu0 %622
          %625 = vset.pattern.permute.xlu0 9
          %626 = vperm.xlu0 %625, %v266
          %v627 = vpop.permute.xlu0 %626
          %v629 = vmul.f32 %v615, %v484
          %v630 = vmul.f32 %v619, %v484
          %v631 = vmul.f32 %v623, %v484
          %v632 = vmul.f32 %v627, %v484
          %637 = vrot.lane.b32.xlu0 %v629, 124
          %v638 = vpop.permute.xlu0 %637
          %639 = vrot.lane.b32.xlu0 %v630, 124
          %v640 = vpop.permute.xlu0 %639
          %641 = vrot.lane.b32.xlu0 %v631, 124
          %v642 = vpop.permute.xlu0 %641
          %643 = vrot.lane.b32.xlu0 %v632, 124
          %v644 = vpop.permute.xlu0 %643
          %v649 = vadd.f32 %v609, %v638
          %v650 = vadd.f32 %v610, %v640
          %v651 = vadd.f32 %v611, %v642
          %v652 = vadd.f32 %v612, %v644
          %653 = vset.pattern.permute.xlu0 10
          %654 = vperm.xlu0 %653, %v263
          %v655 = vpop.permute.xlu0 %654
          %657 = vset.pattern.permute.xlu0 10
          %658 = vperm.xlu0 %657, %v264
          %v659 = vpop.permute.xlu0 %658
          %661 = vset.pattern.permute.xlu0 10
          %662 = vperm.xlu0 %661, %v265
          %v663 = vpop.permute.xlu0 %662
          %665 = vset.pattern.permute.xlu0 10
          %666 = vperm.xlu0 %665, %v266
          %v667 = vpop.permute.xlu0 %666
          %v669 = vperm.slane %v278, 2
          %v670 = vmul.f32 %v655, %v669
          %v671 = vmul.f32 %v659, %v669
          %v672 = vmul.f32 %v663, %v669
          %v673 = vmul.f32 %v667, %v669
          %v674 = vadd.f32 %v649, %v670
          %v675 = vadd.f32 %v650, %v671
          %v676 = vadd.f32 %v651, %v672
          %v677 = vadd.f32 %v652, %v673
          %678 = vset.pattern.permute.xlu0 11
          %679 = vperm.xlu0 %678, %v263
          %v680 = vpop.permute.xlu0 %679
          %682 = vset.pattern.permute.xlu0 11
          %683 = vperm.xlu0 %682, %v264
          %v684 = vpop.permute.xlu0 %683
          %686 = vset.pattern.permute.xlu0 11
          %687 = vperm.xlu0 %686, %v265
          %v688 = vpop.permute.xlu0 %687
          %690 = vset.pattern.permute.xlu0 11
          %691 = vperm.xlu0 %690, %v266
          %v692 = vpop.permute.xlu0 %691
          %v694 = vmul.f32 %v680, %v669
          %v695 = vmul.f32 %v684, %v669
          %v696 = vmul.f32 %v688, %v669
          %v697 = vmul.f32 %v692, %v669
          %702 = vrot.lane.b32.xlu0 %v694, 127
          %v703 = vpop.permute.xlu0 %702
          %704 = vrot.lane.b32.xlu0 %v695, 127
          %v705 = vpop.permute.xlu0 %704
          %706 = vrot.lane.b32.xlu0 %v696, 127
          %v707 = vpop.permute.xlu0 %706
          %708 = vrot.lane.b32.xlu0 %v697, 127
          %v709 = vpop.permute.xlu0 %708
          %v714 = vadd.f32 %v674, %v703
          %v715 = vadd.f32 %v675, %v705
          %v716 = vadd.f32 %v676, %v707
          %v717 = vadd.f32 %v677, %v709
          %718 = vset.pattern.permute.xlu0 12
          %719 = vperm.xlu0 %718, %v263
          %v720 = vpop.permute.xlu0 %719
          %722 = vset.pattern.permute.xlu0 12
          %723 = vperm.xlu0 %722, %v264
          %v724 = vpop.permute.xlu0 %723
          %726 = vset.pattern.permute.xlu0 12
          %727 = vperm.xlu0 %726, %v265
          %v728 = vpop.permute.xlu0 %727
          %730 = vset.pattern.permute.xlu0 12
          %731 = vperm.xlu0 %730, %v266
          %v732 = vpop.permute.xlu0 %731
          %v734 = vmul.f32 %v720, %v669
          %v735 = vmul.f32 %v724, %v669
          %v736 = vmul.f32 %v728, %v669
          %v737 = vmul.f32 %v732, %v669
          %742 = vrot.lane.b32.xlu0 %v734, 126
          %v743 = vpop.permute.xlu0 %742
          %744 = vrot.lane.b32.xlu0 %v735, 126
          %v745 = vpop.permute.xlu0 %744
          %746 = vrot.lane.b32.xlu0 %v736, 126
          %v747 = vpop.permute.xlu0 %746
          %748 = vrot.lane.b32.xlu0 %v737, 126
          %v749 = vpop.permute.xlu0 %748
          %v754 = vadd.f32 %v714, %v743
          %v755 = vadd.f32 %v715, %v745
          %v756 = vadd.f32 %v716, %v747
          %v757 = vadd.f32 %v717, %v749
          %758 = vset.pattern.permute.xlu0 13
          %759 = vperm.xlu0 %758, %v263
          %v760 = vpop.permute.xlu0 %759
          %762 = vset.pattern.permute.xlu0 13
          %763 = vperm.xlu0 %762, %v264
          %v764 = vpop.permute.xlu0 %763
          %766 = vset.pattern.permute.xlu0 13
          %767 = vperm.xlu0 %766, %v265
          %v768 = vpop.permute.xlu0 %767
          %770 = vset.pattern.permute.xlu0 13
          %771 = vperm.xlu0 %770, %v266
          %v772 = vpop.permute.xlu0 %771
          %v774 = vmul.f32 %v760, %v669
          %v775 = vmul.f32 %v764, %v669
          %v776 = vmul.f32 %v768, %v669
          %v777 = vmul.f32 %v772, %v669
          %782 = vrot.lane.b32.xlu0 %v774, 125
          %v783 = vpop.permute.xlu0 %782
          %784 = vrot.lane.b32.xlu0 %v775, 125
          %v785 = vpop.permute.xlu0 %784
          %786 = vrot.lane.b32.xlu0 %v776, 125
          %v787 = vpop.permute.xlu0 %786
          %788 = vrot.lane.b32.xlu0 %v777, 125
          %v789 = vpop.permute.xlu0 %788
          %v794 = vadd.f32 %v754, %v783
          %v795 = vadd.f32 %v755, %v785
          %v796 = vadd.f32 %v756, %v787
          %v797 = vadd.f32 %v757, %v789
          %798 = vset.pattern.permute.xlu0 14
          %799 = vperm.xlu0 %798, %v263
          %v800 = vpop.permute.xlu0 %799
          %802 = vset.pattern.permute.xlu0 14
          %803 = vperm.xlu0 %802, %v264
          %v804 = vpop.permute.xlu0 %803
          %806 = vset.pattern.permute.xlu0 14
          %807 = vperm.xlu0 %806, %v265
          %v808 = vpop.permute.xlu0 %807
          %810 = vset.pattern.permute.xlu0 14
          %811 = vperm.xlu0 %810, %v266
          %v812 = vpop.permute.xlu0 %811
          %v814 = vmul.f32 %v800, %v669
          %v815 = vmul.f32 %v804, %v669
          %v816 = vmul.f32 %v808, %v669
          %v817 = vmul.f32 %v812, %v669
          %822 = vrot.lane.b32.xlu0 %v814, 124
          %v823 = vpop.permute.xlu0 %822
          %824 = vrot.lane.b32.xlu0 %v815, 124
          %v825 = vpop.permute.xlu0 %824
          %826 = vrot.lane.b32.xlu0 %v816, 124
          %v827 = vpop.permute.xlu0 %826
          %828 = vrot.lane.b32.xlu0 %v817, 124
          %v829 = vpop.permute.xlu0 %828
          %v834 = vadd.f32 %v794, %v823
          %v835 = vadd.f32 %v795, %v825
          %v836 = vadd.f32 %v796, %v827
          %v837 = vadd.f32 %v797, %v829
          %838 = vset.pattern.permute.xlu0 15
          %839 = vperm.xlu0 %838, %v263
          %v840 = vpop.permute.xlu0 %839
          %842 = vset.pattern.permute.xlu0 15
          %843 = vperm.xlu0 %842, %v264
          %v844 = vpop.permute.xlu0 %843
          %846 = vset.pattern.permute.xlu0 15
          %847 = vperm.xlu0 %846, %v265
          %v848 = vpop.permute.xlu0 %847
          %850 = vset.pattern.permute.xlu0 15
          %851 = vperm.xlu0 %850, %v266
          %v852 = vpop.permute.xlu0 %851
          %v854 = vperm.slane %v278, 3
          %v855 = vmul.f32 %v840, %v854
          %v856 = vmul.f32 %v844, %v854
          %v857 = vmul.f32 %v848, %v854
          %v858 = vmul.f32 %v852, %v854
          %v859 = vadd.f32 %v834, %v855
          %v860 = vadd.f32 %v835, %v856
          %v861 = vadd.f32 %v836, %v857
          %v862 = vadd.f32 %v837, %v858
          %863 = vset.pattern.permute.xlu0 16
          %864 = vperm.xlu0 %863, %v263
          %v865 = vpop.permute.xlu0 %864
          %867 = vset.pattern.permute.xlu0 16
          %868 = vperm.xlu0 %867, %v264
          %v869 = vpop.permute.xlu0 %868
          %871 = vset.pattern.permute.xlu0 16
          %872 = vperm.xlu0 %871, %v265
          %v873 = vpop.permute.xlu0 %872
          %875 = vset.pattern.permute.xlu0 16
          %876 = vperm.xlu0 %875, %v266
          %v877 = vpop.permute.xlu0 %876
          %v879 = vmul.f32 %v865, %v854
          %v880 = vmul.f32 %v869, %v854
          %v881 = vmul.f32 %v873, %v854
          %v882 = vmul.f32 %v877, %v854
          %887 = vrot.lane.b32.xlu0 %v879, 127
          %v888 = vpop.permute.xlu0 %887
          %889 = vrot.lane.b32.xlu0 %v880, 127
          %v890 = vpop.permute.xlu0 %889
          %891 = vrot.lane.b32.xlu0 %v881, 127
          %v892 = vpop.permute.xlu0 %891
          %893 = vrot.lane.b32.xlu0 %v882, 127
          %v894 = vpop.permute.xlu0 %893
          %v899 = vadd.f32 %v859, %v888
          %v900 = vadd.f32 %v860, %v890
          %v901 = vadd.f32 %v861, %v892
          %v902 = vadd.f32 %v862, %v894
          %903 = vset.pattern.permute.xlu0 17
          %904 = vperm.xlu0 %903, %v263
          %v905 = vpop.permute.xlu0 %904
          %907 = vset.pattern.permute.xlu0 17
          %908 = vperm.xlu0 %907, %v264
          %v909 = vpop.permute.xlu0 %908
          %911 = vset.pattern.permute.xlu0 17
          %912 = vperm.xlu0 %911, %v265
          %v913 = vpop.permute.xlu0 %912
          %915 = vset.pattern.permute.xlu0 17
          %916 = vperm.xlu0 %915, %v266
          %v917 = vpop.permute.xlu0 %916
          %v919 = vmul.f32 %v905, %v854
          %v920 = vmul.f32 %v909, %v854
          %v921 = vmul.f32 %v913, %v854
          %v922 = vmul.f32 %v917, %v854
          %927 = vrot.lane.b32.xlu0 %v919, 126
          %v928 = vpop.permute.xlu0 %927
          %929 = vrot.lane.b32.xlu0 %v920, 126
          %v930 = vpop.permute.xlu0 %929
          %931 = vrot.lane.b32.xlu0 %v921, 126
          %v932 = vpop.permute.xlu0 %931
          %933 = vrot.lane.b32.xlu0 %v922, 126
          %v934 = vpop.permute.xlu0 %933
          %v939 = vadd.f32 %v899, %v928
          %v940 = vadd.f32 %v900, %v930
          %v941 = vadd.f32 %v901, %v932
          %v942 = vadd.f32 %v902, %v934
          %943 = vset.pattern.permute.xlu0 18
          %944 = vperm.xlu0 %943, %v263
          %v945 = vpop.permute.xlu0 %944
          %947 = vset.pattern.permute.xlu0 18
          %948 = vperm.xlu0 %947, %v264
          %v949 = vpop.permute.xlu0 %948
          %951 = vset.pattern.permute.xlu0 18
          %952 = vperm.xlu0 %951, %v265
          %v953 = vpop.permute.xlu0 %952
          %955 = vset.pattern.permute.xlu0 18
          %956 = vperm.xlu0 %955, %v266
          %v957 = vpop.permute.xlu0 %956
          %v959 = vmul.f32 %v945, %v854
          %v960 = vmul.f32 %v949, %v854
          %v961 = vmul.f32 %v953, %v854
          %v962 = vmul.f32 %v957, %v854
          %967 = vrot.lane.b32.xlu0 %v959, 125
          %v968 = vpop.permute.xlu0 %967
          %969 = vrot.lane.b32.xlu0 %v960, 125
          %v970 = vpop.permute.xlu0 %969
          %971 = vrot.lane.b32.xlu0 %v961, 125
          %v972 = vpop.permute.xlu0 %971
          %973 = vrot.lane.b32.xlu0 %v962, 125
          %v974 = vpop.permute.xlu0 %973
          %v979 = vadd.f32 %v939, %v968
          %v980 = vadd.f32 %v940, %v970
          %v981 = vadd.f32 %v941, %v972
          %v982 = vadd.f32 %v942, %v974
          %983 = vset.pattern.permute.xlu0 19
          %984 = vperm.xlu0 %983, %v263
          %v985 = vpop.permute.xlu0 %984
          %987 = vset.pattern.permute.xlu0 19
          %988 = vperm.xlu0 %987, %v264
          %v989 = vpop.permute.xlu0 %988
          %991 = vset.pattern.permute.xlu0 19
          %992 = vperm.xlu0 %991, %v265
          %v993 = vpop.permute.xlu0 %992
          %995 = vset.pattern.permute.xlu0 19
          %996 = vperm.xlu0 %995, %v266
          %v997 = vpop.permute.xlu0 %996
          %v999 = vmul.f32 %v985, %v854
          %v1000 = vmul.f32 %v989, %v854
          %v1001 = vmul.f32 %v993, %v854
          %v1002 = vmul.f32 %v997, %v854
          %1007 = vrot.lane.b32.xlu0 %v999, 124
          %v1008 = vpop.permute.xlu0 %1007
          %1009 = vrot.lane.b32.xlu0 %v1000, 124
          %v1010 = vpop.permute.xlu0 %1009
          %1011 = vrot.lane.b32.xlu0 %v1001, 124
          %v1012 = vpop.permute.xlu0 %1011
          %1013 = vrot.lane.b32.xlu0 %v1002, 124
          %v1014 = vpop.permute.xlu0 %1013
          %v1019 = vadd.f32 %v979, %v1008
          %v1020 = vadd.f32 %v980, %v1010
          %v1021 = vadd.f32 %v981, %v1012
          %v1022 = vadd.f32 %v982, %v1014
          %1023 = vset.pattern.permute.xlu0 20
          %1024 = vperm.xlu0 %1023, %v263
          %v1025 = vpop.permute.xlu0 %1024
          %1027 = vset.pattern.permute.xlu0 20
          %1028 = vperm.xlu0 %1027, %v264
          %v1029 = vpop.permute.xlu0 %1028
          %1031 = vset.pattern.permute.xlu0 20
          %1032 = vperm.xlu0 %1031, %v265
          %v1033 = vpop.permute.xlu0 %1032
          %1035 = vset.pattern.permute.xlu0 20
          %1036 = vperm.xlu0 %1035, %v266
          %v1037 = vpop.permute.xlu0 %1036
          %v1039 = vperm.slane %v278, 4
          %v1040 = vmul.f32 %v1025, %v1039
          %v1041 = vmul.f32 %v1029, %v1039
          %v1042 = vmul.f32 %v1033, %v1039
          %v1043 = vmul.f32 %v1037, %v1039
          %v1044 = vadd.f32 %v1019, %v1040
          %v1045 = vadd.f32 %v1020, %v1041
          %v1046 = vadd.f32 %v1021, %v1042
          %v1047 = vadd.f32 %v1022, %v1043
          %1048 = vset.pattern.permute.xlu0 21
          %1049 = vperm.xlu0 %1048, %v263
          %v1050 = vpop.permute.xlu0 %1049
          %1052 = vset.pattern.permute.xlu0 21
          %1053 = vperm.xlu0 %1052, %v264
          %v1054 = vpop.permute.xlu0 %1053
          %1056 = vset.pattern.permute.xlu0 21
          %1057 = vperm.xlu0 %1056, %v265
          %v1058 = vpop.permute.xlu0 %1057
          %1060 = vset.pattern.permute.xlu0 21
          %1061 = vperm.xlu0 %1060, %v266
          %v1062 = vpop.permute.xlu0 %1061
          %v1064 = vmul.f32 %v1050, %v1039
          %v1065 = vmul.f32 %v1054, %v1039
          %v1066 = vmul.f32 %v1058, %v1039
          %v1067 = vmul.f32 %v1062, %v1039
          %1072 = vrot.lane.b32.xlu0 %v1064, 127
          %v1073 = vpop.permute.xlu0 %1072
          %1074 = vrot.lane.b32.xlu0 %v1065, 127
          %v1075 = vpop.permute.xlu0 %1074
          %1076 = vrot.lane.b32.xlu0 %v1066, 127
          %v1077 = vpop.permute.xlu0 %1076
          %1078 = vrot.lane.b32.xlu0 %v1067, 127
          %v1079 = vpop.permute.xlu0 %1078
          %v1084 = vadd.f32 %v1044, %v1073
          %v1085 = vadd.f32 %v1045, %v1075
          %v1086 = vadd.f32 %v1046, %v1077
          %v1087 = vadd.f32 %v1047, %v1079
          %1088 = vset.pattern.permute.xlu0 22
          %1089 = vperm.xlu0 %1088, %v263
          %v1090 = vpop.permute.xlu0 %1089
          %1092 = vset.pattern.permute.xlu0 22
          %1093 = vperm.xlu0 %1092, %v264
          %v1094 = vpop.permute.xlu0 %1093
          %1096 = vset.pattern.permute.xlu0 22
          %1097 = vperm.xlu0 %1096, %v265
          %v1098 = vpop.permute.xlu0 %1097
          %1100 = vset.pattern.permute.xlu0 22
          %1101 = vperm.xlu0 %1100, %v266
          %v1102 = vpop.permute.xlu0 %1101
          %v1104 = vmul.f32 %v1090, %v1039
          %v1105 = vmul.f32 %v1094, %v1039
          %v1106 = vmul.f32 %v1098, %v1039
          %v1107 = vmul.f32 %v1102, %v1039
          %1112 = vrot.lane.b32.xlu0 %v1104, 126
          %v1113 = vpop.permute.xlu0 %1112
          %1114 = vrot.lane.b32.xlu0 %v1105, 126
          %v1115 = vpop.permute.xlu0 %1114
          %1116 = vrot.lane.b32.xlu0 %v1106, 126
          %v1117 = vpop.permute.xlu0 %1116
          %1118 = vrot.lane.b32.xlu0 %v1107, 126
          %v1119 = vpop.permute.xlu0 %1118
          %v1124 = vadd.f32 %v1084, %v1113
          %v1125 = vadd.f32 %v1085, %v1115
          %v1126 = vadd.f32 %v1086, %v1117
          %v1127 = vadd.f32 %v1087, %v1119
          %1128 = vset.pattern.permute.xlu0 23
          %1129 = vperm.xlu0 %1128, %v263
          %v1130 = vpop.permute.xlu0 %1129
          %1132 = vset.pattern.permute.xlu0 23
          %1133 = vperm.xlu0 %1132, %v264
          %v1134 = vpop.permute.xlu0 %1133
          %1136 = vset.pattern.permute.xlu0 23
          %1137 = vperm.xlu0 %1136, %v265
          %v1138 = vpop.permute.xlu0 %1137
          %1140 = vset.pattern.permute.xlu0 23
          %1141 = vperm.xlu0 %1140, %v266
          %v1142 = vpop.permute.xlu0 %1141
          %v1144 = vmul.f32 %v1130, %v1039
          %v1145 = vmul.f32 %v1134, %v1039
          %v1146 = vmul.f32 %v1138, %v1039
          %v1147 = vmul.f32 %v1142, %v1039
          %1152 = vrot.lane.b32.xlu0 %v1144, 125
          %v1153 = vpop.permute.xlu0 %1152
          %1154 = vrot.lane.b32.xlu0 %v1145, 125
          %v1155 = vpop.permute.xlu0 %1154
          %1156 = vrot.lane.b32.xlu0 %v1146, 125
          %v1157 = vpop.permute.xlu0 %1156
          %1158 = vrot.lane.b32.xlu0 %v1147, 125
          %v1159 = vpop.permute.xlu0 %1158
          %v1164 = vadd.f32 %v1124, %v1153
          %v1165 = vadd.f32 %v1125, %v1155
          %v1166 = vadd.f32 %v1126, %v1157
          %v1167 = vadd.f32 %v1127, %v1159
          %1168 = vset.pattern.permute.xlu0 24
          %1169 = vperm.xlu0 %1168, %v263
          %v1170 = vpop.permute.xlu0 %1169
          %1172 = vset.pattern.permute.xlu0 24
          %1173 = vperm.xlu0 %1172, %v264
          %v1174 = vpop.permute.xlu0 %1173
          %1176 = vset.pattern.permute.xlu0 24
          %1177 = vperm.xlu0 %1176, %v265
          %v1178 = vpop.permute.xlu0 %1177
          %1180 = vset.pattern.permute.xlu0 24
          %1181 = vperm.xlu0 %1180, %v266
          %v1182 = vpop.permute.xlu0 %1181
          %v1184 = vmul.f32 %v1170, %v1039
          %v1185 = vmul.f32 %v1174, %v1039
          %v1186 = vmul.f32 %v1178, %v1039
          %v1187 = vmul.f32 %v1182, %v1039
          %1192 = vrot.lane.b32.xlu0 %v1184, 124
          %v1193 = vpop.permute.xlu0 %1192
          %1194 = vrot.lane.b32.xlu0 %v1185, 124
          %v1195 = vpop.permute.xlu0 %1194
          %1196 = vrot.lane.b32.xlu0 %v1186, 124
          %v1197 = vpop.permute.xlu0 %1196
          %1198 = vrot.lane.b32.xlu0 %v1187, 124
          %v1199 = vpop.permute.xlu0 %1198
          %v1204 = vadd.f32 %v1164, %v1193
          %v1205 = vadd.f32 %v1165, %v1195
          %v1206 = vadd.f32 %v1166, %v1197
          %v1207 = vadd.f32 %v1167, %v1199
          %1209 = vset.pattern.permute.xlu0 0
          %1210 = vperm.xlu0 %1209, %v267
          %v1211 = vpop.permute.xlu0 %1210
          %1214 = vset.pattern.permute.xlu0 0
          %1215 = vperm.xlu0 %1214, %v268
          %v1216 = vpop.permute.xlu0 %1215
          %1219 = vset.pattern.permute.xlu0 0
          %1220 = vperm.xlu0 %1219, %v269
          %v1221 = vpop.permute.xlu0 %1220
          %1224 = vset.pattern.permute.xlu0 0
          %1225 = vperm.xlu0 %1224, %v270
          %v1226 = vpop.permute.xlu0 %1225
          %v1228 = vadd.f32 %v1204, %v1211
          %v1229 = vadd.f32 %v1205, %v1216
          %v1230 = vadd.f32 %v1206, %v1221
          %v1231 = vadd.f32 %v1207, %v1226
          %v1232 = vpack.c.bf16 %v1228, %v1228
          %v1233 = vpack.c.bf16 %v1229, %v1229
          %v1234 = vpack.c.bf16 %v1230, %v1230
          %v1235 = vpack.c.bf16 %v1231, %v1231
          %s1236 = smul.u32 %s272, 4
          %s1237 = smul.addr %s1236, 4
          %s1238 = scalar_lea.vmem %s222, %s1237
          %vm1239 = vcmask 109568
          %1240 = vst.msk [vmem:[%s1238] sm:$0xf] %vm1239, %v1232
          %1241 = vst.msk [vmem:[%s1238 + $0x4] sm:$0xf] %vm1239, %v1233
          %1242 = vst.msk [vmem:[%s1238 + $0x8] sm:$0xf] %vm1239, %v1234
          %1243 = vst.msk [vmem:[%s1238 + $0xc] sm:$0xf] %vm1239, %v1235
          %v1244 = vld [vmem:[#allocation3] sm:$0xff]
          %v1245 = vld [vmem:[#allocation3 + $0x8] sm:$0xff]
          %v1246 = vld [vmem:[#allocation3 + $0x10] sm:$0xff]
          %v1247 = vld [vmem:[#allocation3 + $0x18] sm:$0xff]
          %v1248 = vadd.f32 %v1244, %v1228
          %v1249 = vadd.f32 %v1245, %v1229
          %v1250 = vadd.f32 %v1246, %v1230
          %v1251 = vadd.f32 %v1247, %v1231
          %1252 = vst.msk [vmem:[#allocation3] sm:$0xff] %vm254, %v1248
          %1253 = vst.msk [vmem:[#allocation3 + $0x8] sm:$0xff] %vm254, %v1249
          %1254 = vst.msk [vmem:[#allocation3 + $0x10] sm:$0xff] %vm254, %v1250
          %1255 = vst.msk [vmem:[#allocation3 + $0x18] sm:$0xff] %vm254, %v1251
          %v1256 = vld [vmem:[#allocation4] sm:$0xff]
          %v1257 = vld [vmem:[#allocation4 + $0x8] sm:$0xff]
          %v1258 = vld [vmem:[#allocation4 + $0x10] sm:$0xff]
          %v1259 = vld [vmem:[#allocation4 + $0x18] sm:$0xff]
          %v1260 = vmul.f32 %v1228, %v1228
          %v1261 = vmul.f32 %v1229, %v1229
          %v1262 = vmul.f32 %v1230, %v1230
          %v1263 = vmul.f32 %v1231, %v1231
          %v1264 = vadd.f32 %v1256, %v1260
          %v1265 = vadd.f32 %v1257, %v1261
          %v1266 = vadd.f32 %v1258, %v1262
          %v1267 = vadd.f32 %v1259, %v1263
          %1268 = vst.msk [vmem:[#allocation4] sm:$0xff] %vm254, %v1264
          %1269 = vst.msk [vmem:[#allocation4 + $0x8] sm:$0xff] %vm254, %v1265
          %1270 = vst.msk [vmem:[#allocation4 + $0x10] sm:$0xff] %vm254, %v1266
          %1271 = vst.msk [vmem:[#allocation4 + $0x18] sm:$0xff] %vm254, %v1267
        $region41: #{tpu_custom_call.1} parent=31 // loop_footer
          %s276 = sadd.s32 1, %s272
        $region42: #{tpu_custom_call.1} parent=31 // loop_footer_branch
          %271 = sbr.rel target = $region38
        $region43: #{tpu_custom_call.1} parent=31 // loop_exit
          _
        %v1272 = vld [vmem:[#allocation3] sm:$0xff]
        %v1273 = vld [vmem:[#allocation3 + $0x8] sm:$0xff]
        %v1274 = vld [vmem:[#allocation3 + $0x10] sm:$0xff]
        %v1275 = vld [vmem:[#allocation3 + $0x18] sm:$0xff]
        %v1276 = vsel %vm254, %v1272, 0.0
        %1277 = vadd.xlane.f32.xlu0 %v1276
        %v1278 = vpop.xlane.xlu0 %1277
        %v1279 = vsel %vm254, %v1273, 0.0
        %1280 = vadd.xlane.f32.xlu0 %v1279
        %v1281 = vpop.xlane.xlu0 %1280
        %v1282 = vsel %vm254, %v1274, 0.0
        %1283 = vadd.xlane.f32.xlu0 %v1282
        %v1284 = vpop.xlane.xlu0 %1283
        %v1285 = vsel %vm254, %v1275, 0.0
        %1286 = vadd.xlane.f32.xlu0 %v1285
        %v1287 = vpop.xlane.xlu0 %1286
        %1288 = vst.msk [vmem:[%s227] sm:$0xff] %vm231, %v1278
        %1289 = vst.msk [vmem:[%s227 + $0x8] sm:$0xff] %vm231, %v1281
        %1290 = vst.msk [vmem:[%s227 + $0x10] sm:$0xff] %vm231, %v1284
        %1291 = vst.msk [vmem:[%s227 + $0x18] sm:$0xff] %vm231, %v1287
        %v1292 = vld [vmem:[#allocation4] sm:$0xff]
        %v1293 = vld [vmem:[#allocation4 + $0x8] sm:$0xff]
        %v1294 = vld [vmem:[#allocation4 + $0x10] sm:$0xff]
        %v1295 = vld [vmem:[#allocation4 + $0x18] sm:$0xff]
        %v1296 = vsel %vm254, %v1292, 0.0
        %1297 = vadd.xlane.f32.xlu0 %v1296
        %v1298 = vpop.xlane.xlu0 %1297
        %v1299 = vsel %vm254, %v1293, 0.0
        %1300 = vadd.xlane.f32.xlu0 %v1299
        %v1301 = vpop.xlane.xlu0 %1300
        %v1302 = vsel %vm254, %v1294, 0.0
        %1303 = vadd.xlane.f32.xlu0 %v1302
        %v1304 = vpop.xlane.xlu0 %1303
        %v1305 = vsel %vm254, %v1295, 0.0
        %1306 = vadd.xlane.f32.xlu0 %v1305
        %v1307 = vpop.xlane.xlu0 %1306
        %vm1308 = vcmask 15368
        %1309 = vst.msk [vmem:[%s227] sm:$0xff] %vm1308, %v1298
        %1310 = vst.msk [vmem:[%s227 + $0x8] sm:$0xff] %vm1308, %v1301
        %1311 = vst.msk [vmem:[%s227 + $0x10] sm:$0xff] %vm1308, %v1304
        %1312 = vst.msk [vmem:[%s227 + $0x18] sm:$0xff] %vm1308, %v1307
        %p1313 = scmp.lt.s32.totalorder %s17, 1
        %s1314 = scalar_select %p1313, %s17, 1
        %s1315 = smul.addr %s1314, 56
        %s1316 = smul.addr %s1315, 4
        %s1317 = scalar_lea.vmem %s3, %s1316
        %p1318 = scmp.lt.s32.totalorder %s17, 1
        %s1319 = scalar_select %p1318, %s17, 1
        %s1320 = smul.addr %s1319, 4
        %s1321 = smul.addr %s1320, 8
        %s1322 = scalar_lea.vmem %s4, %s1321
        // Predicated region
        $region44: #{tpu_custom_call.1} parent=31 // pred_check
          %p1323 = pneg %p103
        $region45: #{tpu_custom_call.1} parent=31 // pred_check_branch
          %1325 = sbr.rel (%p1323) target = $region47
        $region46: #{tpu_custom_call.1} parent=31 // pred_region
          _
        $region47: #{tpu_custom_call.1} parent=31 // pred_fallthru
          _
        // Predicated region
        $region48: #{tpu_custom_call.1} parent=31 // pred_check
          %p1326 = pneg %p129
        $region49: #{tpu_custom_call.1} parent=31 // pred_check_branch
          %1328 = sbr.rel (%p1326) target = $region51
        $region50: #{tpu_custom_call.1} parent=31 // pred_region
          _
        $region51: #{tpu_custom_call.1} parent=31 // pred_fallthru
          _
      $region32: #{tpu_custom_call.1} parent=5 // pred_fallthru
        _
      %p1329 = scmp.le.s32.totalorder 2, %s12
      // Predicated region
      $region52: #{tpu_custom_call.1} parent=5 // pred_check
        %p1330 = pneg %p1329
      $region53: #{tpu_custom_call.1} parent=5 // pred_check_branch
        %1332 = sbr.rel (%p1330) target = $region55
      $region54: #{tpu_custom_call.1} parent=5 // pred_region
        %s1333 = ssub.s32 %s12, 2
        // Predicated region
        $region56: #{tpu_custom_call.1} parent=54 // pred_check
          %p1334 = pneg %p109
        $region57: #{tpu_custom_call.1} parent=54 // pred_check_branch
          %1336 = sbr.rel (%p1334) target = $region59
        $region58: #{tpu_custom_call.1} parent=54 // pred_region
          %p1337 = scmp.lt.s32.totalorder %s18, 1
          %s1338 = scalar_select %p1337, %s18, 1
          %s1339 = smul.addr %s1338, 56
          %s1340 = smul.addr %s1339, 4
          %s1341 = scalar_lea.vmem %s3, %s1340
        $region59: #{tpu_custom_call.1} parent=54 // pred_fallthru
          _
        // Predicated region
        $region60: #{tpu_custom_call.1} parent=54 // pred_check
          %p1342 = pneg %p135
        $region61: #{tpu_custom_call.1} parent=54 // pred_check_branch
          %1344 = sbr.rel (%p1342) target = $region63
        $region62: #{tpu_custom_call.1} parent=54 // pred_region
          %p1345 = scmp.lt.s32.totalorder %s18, 1
          %s1346 = scalar_select %p1345, %s18, 1
          %s1347 = smul.addr %s1346, 4
          %s1348 = smul.addr %s1347, 8
          %s1349 = scalar_lea.vmem %s4, %s1348
        $region63: #{tpu_custom_call.1} parent=54 // pred_fallthru
          _
      $region55: #{tpu_custom_call.1} parent=5 // pred_fallthru
        _
    $region6: #{tpu_custom_call.1} parent=1 // loop_footer
      %s16 = sadd.s32 1, %s12
    $region7: #{tpu_custom_call.1} parent=1 // loop_footer_branch
      %11 = sbr.rel target = $region3
    $region8: #{tpu_custom_call.1} parent=1 // loop_exit
      _
    %1350 = vsyncpa [#allocation6], 1
    %s1351 = scalar_lea.sflag [#allocation6], 1
    %1352 = vsyncpa %s1351, 1

</llo_original>
